<compile_context>
chip_gen: v5e
topology: v5e:2x2
jax: 0.10.0
libtpu: 0.0.40
codegen_flags: <defaults>
</compile_context>

<pallas_src>
import functools

import jax
import jax.numpy as jnp
from jax import lax
from jax.experimental import pallas as pl
from jax.experimental.pallas import tpu as pltpu


def _round_up(n, m):
    return (n + m - 1) // m * m


# ------------------------- fused multi-layer LSTM kernel -----------------------
def fused_lstm_kernel(nlayers, T_real, Tc, *refs):
    """One grid step = one time chunk of Tc steps through ALL layers + decoder.

    Inputs (2-D slabs, rows ordered (t, b) unless noted):
      x_ref    : (Tc*Bp, ninp)          chunk of the model input
      h0/c0    : (nlayers, Bp, H)       initial state (read only at chunk 0)
      per layer l: wih (Din_l, G), whh (H, G), bias (1, G)   gate-packed, G = ceil128(4H)
      wdec     : (H, Np), bdec (1, Np)  decoder (fused)
    Outputs:
      out_ref  : (Tc*Bp, Np)            decoded chunk
      hT/cT    : (nlayers, Bp, H)       final state
    Scratch:
      h_scr/c_scr : (nlayers, Bp, H) f32 state carries (persist across chunks)
      gp_scr      : (Tc*Bp, G) f32      hoisted input projection (reused per layer)
      ys_scr      : (Tc*Bp, H) f32      current layer's hidden chunk (reused per layer)
    """
    n_in = 5 + 3 * nlayers
    x_ref, h0_ref, c0_ref = refs[0], refs[1], refs[2]
    layer_refs = [refs[3 + 3 * l: 3 + 3 * (l + 1)] for l in range(nlayers)]
    wdec_ref, bdec_ref = refs[3 + 3 * nlayers], refs[4 + 3 * nlayers]
    out_ref, hT_ref, cT_ref = refs[n_in], refs[n_in + 1], refs[n_in + 2]
    h_scr, c_scr, gp_scr, ys_scr = refs[n_in + 3:]

    chunk = pl.program_id(0)
    Bp, Hg = h_scr.shape[1], h_scr.shape[2]     # per-gate width == nhid (packed)
    G = gp_scr.shape[1]

    @pl.when(chunk == 0)
    def _():
        h_scr[...] = h0_ref[...].astype(jnp.float32)
        c_scr[...] = c0_ref[...].astype(jnp.float32)

    # Hoisted g-gate lane mask: lanes [2*Hg, 3*Hg) take tanh, the rest sigmoid.
    lane = lax.broadcasted_iota(jnp.int32, (Bp, G), 1)
    g_mask = (lane >= 2 * Hg) & (lane < 3 * Hg)

    need_mask = (T_real % Tc) != 0   # static: only mask when T was padded up

    for l in range(nlayers):
        wih_ref, whh_ref, b_ref = layer_refs[l]
        src = x_ref if l == 0 else ys_scr   # inter-layer activations stay in VMEM

        # (1) Hoisted input projection for the whole chunk (bias folded in).
        gp_scr[...] = (jnp.dot(src[...], wih_ref[...],
                               preferred_element_type=jnp.float32)
                       + b_ref[...])

        # (2) Serial recurrence: only h @ W_hh per step; gates are one 128-lane
        #     slab, activations = 1 sigmoid + 1 tanh blended by g_mask.
        def step(t, carry, whh_ref=whh_ref):
            h, c = carry
            row = pl.multiple_of(t * Bp, Bp)
            gates = (gp_scr[pl.ds(row, Bp), :]
                     + jnp.dot(h, whh_ref[...],
                               preferred_element_type=jnp.float32))
            act = jnp.where(g_mask, jnp.tanh(gates), jax.nn.sigmoid(gates))
            i = act[:, 0 * Hg:1 * Hg]   # PyTorch gate order i, f, g, o
            f = act[:, 1 * Hg:2 * Hg]
            g = act[:, 2 * Hg:3 * Hg]
            o = act[:, 3 * Hg:4 * Hg]
            c_new = f * c + i * g
            h_new = o * jnp.tanh(c_new)
            if need_mask:   # freeze state on padded timesteps so hT/cT stay exact
                keep = (chunk * Tc + t) < T_real
                h_new = jnp.where(keep, h_new, h)
                c_new = jnp.where(keep, c_new, c)
            ys_scr[pl.ds(row, Bp), :] = h_new
            return h_new, c_new

        h, c = lax.fori_loop(0, Tc, step, (h_scr[l], c_scr[l]), unroll=True)
        h_scr[l] = h
        c_scr[l] = c

    # (3) Fused decoder + lane-dense chunk writeback; final state every chunk
    #     (constant output block index -> resident, last chunk's value survives).
    out_ref[...] = (jnp.dot(ys_scr[...], wdec_ref[...],
                            preferred_element_type=jnp.float32)
                    + bdec_ref[...]).astype(out_ref.dtype)
    hT_ref[...] = h_scr[...].astype(hT_ref.dtype)
    cT_ref[...] = c_scr[...].astype(cT_ref.dtype)


def fused_rnn(x2d, h0p, c0p, lstm_params, dec_params, *, Tc, T_real):
    """Whole model (all LSTM layers + decoder) in one pallas_call."""
    M, ninp = x2d.shape
    nlayers, Bp, H = h0p.shape
    G = lstm_params[0][1].shape[1]    # whh: (H, G)
    Np = dec_params[0].shape[1]
    n_chunks = M // (Tc * Bp)

    kernel = functools.partial(fused_lstm_kernel, nlayers, T_real, Tc)

    in_specs = [
        pl.BlockSpec((Tc * Bp, ninp), lambda c: (c, 0)),          # x chunk
        pl.BlockSpec((nlayers, Bp, H), lambda c: (0, 0, 0)),      # h0
        pl.BlockSpec((nlayers, Bp, H), lambda c: (0, 0, 0)),      # c0
    ]
    args = [x2d, h0p, c0p]
    for l in range(nlayers):
        wih, whh, b = lstm_params[l]
        din = wih.shape[0]
        in_specs += [pl.BlockSpec((din, G), lambda c: (0, 0)),    # W_ih^T (resident)
                     pl.BlockSpec((H, G), lambda c: (0, 0)),      # W_hh^T (resident)
                     pl.BlockSpec((1, G), lambda c: (0, 0))]      # b_ih + b_hh
        args += [wih, whh, b]
    wdec, bdec = dec_params
    in_specs += [pl.BlockSpec((H, Np), lambda c: (0, 0)),         # W_dec^T
                 pl.BlockSpec((1, Np), lambda c: (0, 0))]         # b_dec
    args += [wdec, bdec]

    out_shape = (jax.ShapeDtypeStruct((M, Np), x2d.dtype),
                 jax.ShapeDtypeStruct((nlayers, Bp, H), x2d.dtype),
                 jax.ShapeDtypeStruct((nlayers, Bp, H), x2d.dtype))
    out_specs = [pl.BlockSpec((Tc * Bp, Np), lambda c: (c, 0)),
                 pl.BlockSpec((nlayers, Bp, H), lambda c: (0, 0, 0)),
                 pl.BlockSpec((nlayers, Bp, H), lambda c: (0, 0, 0))]
    scratch = [pltpu.VMEM((nlayers, Bp, H), jnp.float32),   # h carry (all layers)
               pltpu.VMEM((nlayers, Bp, H), jnp.float32),   # c carry (all layers)
               pltpu.VMEM((Tc * Bp, G), jnp.float32),       # projected gates (reused)
               pltpu.VMEM((Tc * Bp, H), jnp.float32)]       # layer hidden chunk (reused)

    return pl.pallas_call(
        kernel,
        out_shape=out_shape,
        grid_spec=pltpu.PrefetchScalarGridSpec(
            num_scalar_prefetch=0,
            grid=(n_chunks,),
            in_specs=in_specs,
            out_specs=out_specs,
            scratch_shapes=scratch),
        compiler_params=pltpu.CompilerParams(
            dimension_semantics=("arbitrary",)),   # sequential recurrence over T
    )(*args)


# --------------------- one-time parameter prep (hoisted pads) ------------------
def prepare_params(params, nhid, ntag):
    """Pad weights once to TPU-friendly lane widths: the 4 gates are packed
    contiguously and the slab is padded at the end to a multiple of 128 lanes;
    decoder output padded to 128 lanes."""
    G = _round_up(4 * nhid, 128)
    Np = _round_up(ntag, 128)
    pad_g = G - 4 * nhid
    lstm = []
    for wih_t, whh_t, bias in params["lstm"]:
        lstm.append((jnp.pad(wih_t, ((0, 0), (0, pad_g))),
                     jnp.pad(whh_t, ((0, 0), (0, pad_g))),
                     jnp.pad(bias, ((0, 0), (0, pad_g)))))
    wdec_t, bdec = params["dec"]
    dec = (jnp.pad(wdec_t, ((0, 0), (0, Np - ntag))),
           jnp.pad(bdec, ((0, 0), (0, Np - ntag))))
    return {"lstm": tuple(lstm), "dec": dec}


# ------------------------------- full forward ----------------------------------
@functools.partial(jax.jit, static_argnames=("ntag",))
def rnn_model_forward(x, h0, c0, prepared, *, ntag):
    """Pallas equivalent of RNNModel.forward(input, hidden) for rnn_type='LSTM'.

    x: (T, B, ninp); h0, c0: (nlayers, B, nhid)
    returns (decoded (T, B, ntag), (hN, cN) each (nlayers, B, nhid))
    """
    T, B, ninp = x.shape
    nlayers, _, nhid = h0.shape
    Np = prepared["dec"][0].shape[1]

    Bp = _round_up(B, 8)           # fill f32 sublanes
    Tc = T if T <= 32 else 32      # timesteps per grid step
    Tp = _round_up(T, Tc)

    # Zero padding: padded batch rows / timesteps are independent of the real
    # ones (padded steps are frozen in-kernel) and sliced off afterwards.
    xp = jnp.pad(x, ((0, Tp - T), (0, Bp - B), (0, 0)))
    h0p = jnp.pad(h0, ((0, 0), (0, Bp - B), (0, 0)))
    c0p = jnp.pad(c0, ((0, 0), (0, Bp - B), (0, 0)))

    x2d = xp.reshape(Tp * Bp, ninp)          # 2-D slab, rows ordered (t, b)
    decoded2d, hT, cT = fused_rnn(x2d, h0p, c0p,
                                  prepared["lstm"], prepared["dec"],
                                  Tc=Tc, T_real=T)
    decoded = decoded2d.reshape(Tp, Bp, Np)[:T, :B, :ntag]
    return decoded, (hT[:, :B, :], cT[:, :B, :])


# --------------------------- pure-JAX reference --------------------------------
def reference_forward(x, h0, c0, params):
    nlayers = h0.shape[0]
    H = h0.shape[-1]
    layer_in = x
    hN, cN = [], []
    for l in range(nlayers):
        wih_t, whh_t, bias = params["lstm"][l]
        h, c = h0[l], c0[l]
        ys = []
        for t in range(x.shape[0]):
            gates = layer_in[t] @ wih_t + h @ whh_t + bias
            i = jax.nn.sigmoid(gates[:, 0 * H:1 * H])
            f = jax.nn.sigmoid(gates[:, 1 * H:2 * H])
            g = jnp.tanh(gates[:, 2 * H:3 * H])
            o = jax.nn.sigmoid(gates[:, 3 * H:4 * H])
            c = f * c + i * g
            h = o * jnp.tanh(c)
            ys.append(h)
        layer_in = jnp.stack(ys, axis=0)
        hN.append(h)
        cN.append(c)
    w_dec_t, b_dec = params["dec"]
    decoded = layer_in @ w_dec_t + b_dec
    return decoded, (jnp.stack(hN, 0), jnp.stack(cN, 0))


# ------------------------------ parameter init ---------------------------------
def init_params(key, ninp, ntag, nhid, nlayers):
    """PyTorch-shaped params (stored pre-transposed, biases pre-summed).

    LSTM per layer: W_ih (4H, Din), W_hh (4H, H), b_ih/b_hh (4H,), U(-1/sqrt(H), ...).
    Decoder: weight U(-0.1, 0.1), bias 0 (per init_weights()).
    """
    params = {"lstm": [], "dec": None}
    stdv = 1.0 / jnp.sqrt(jnp.float32(nhid))
    for l in range(nlayers):
        din = ninp if l == 0 else nhid
        key, k1, k2, k3, k4 = jax.random.split(key, 5)
        wih = jax.random.uniform(k1, (4 * nhid, din), jnp.float32, -stdv, stdv)
        whh = jax.random.uniform(k2, (4 * nhid, nhid), jnp.float32, -stdv, stdv)
        bih = jax.random.uniform(k3, (4 * nhid,), jnp.float32, -stdv, stdv)
        bhh = jax.random.uniform(k4, (4 * nhid,), jnp.float32, -stdv, stdv)
        params["lstm"].append((wih.T, whh.T, (bih + bhh).reshape(1, 4 * nhid)))
    key, kd = jax.random.split(key)
    w_dec = jax.random.uniform(kd, (ntag, nhid), jnp.float32, -0.1, 0.1)
    b_dec = jnp.zeros((1, ntag), jnp.float32)
    params["dec"] = (w_dec.T, b_dec)
    return params


# ----------------------------------- main ---------------------------------------
if __name__ == "__main__":
    # RNNModel('LSTM', ninp=16, ntag=10, nhid=32, nlayers=2, dropout=0)
    T, B, ninp, ntag, nhid, nlayers = 8, 2, 16, 10, 32, 2

    key = jax.random.PRNGKey(0)
    kx, kp = jax.random.split(key)
    x = jax.random.normal(kx, (T, B, ninp), jnp.float32)
    h0 = jnp.zeros((nlayers, B, nhid), jnp.float32)     # init_hidden(bsz)
    c0 = jnp.zeros((nlayers, B, nhid), jnp.float32)
    params = init_params(kp, ninp, ntag, nhid, nlayers)
    prepared = prepare_params(params, nhid, ntag)       # one-time weight padding

    decoded, (hN, cN) = rnn_model_forward(x, h0, c0, prepared, ntag=ntag)
    jax.block_until_ready((decoded, hN, cN))

    ref_dec, (ref_h, ref_c) = reference_forward(x, h0, c0, params)
    assert decoded.shape == (T, B, ntag)
    assert hN.shape == (nlayers, B, nhid) and cN.shape == (nlayers, B, nhid)
    assert jnp.allclose(decoded, ref_dec, atol=2e-4, rtol=2e-4)
    assert jnp.allclose(hN, ref_h, atol=2e-4, rtol=2e-4)
    assert jnp.allclose(cN, ref_c, atol=2e-4, rtol=2e-4)

    print("KERNEL_OK")
</pallas_src>

<mosaic_0001>
module attributes {stable_mosaic.version = 11 : i64} {
  func.func @fused_lstm_kernel(%arg0: i32, %arg1: memref<64x16xf32, #tpu.memory_space<vmem>>, %arg2: memref<2x8x32xf32, #tpu.memory_space<vmem>>, %arg3: memref<2x8x32xf32, #tpu.memory_space<vmem>>, %arg4: memref<16x128xf32, #tpu.memory_space<vmem>>, %arg5: memref<32x128xf32, #tpu.memory_space<vmem>>, %arg6: memref<1x128xf32, #tpu.memory_space<vmem>>, %arg7: memref<32x128xf32, #tpu.memory_space<vmem>>, %arg8: memref<32x128xf32, #tpu.memory_space<vmem>>, %arg9: memref<1x128xf32, #tpu.memory_space<vmem>>, %arg10: memref<32x128xf32, #tpu.memory_space<vmem>>, %arg11: memref<1x128xf32, #tpu.memory_space<vmem>>, %arg12: memref<64x128xf32, #tpu.memory_space<vmem>>, %arg13: memref<2x8x32xf32, #tpu.memory_space<vmem>>, %arg14: memref<2x8x32xf32, #tpu.memory_space<vmem>>, %arg15: memref<2x8x32xf32, #tpu.memory_space<vmem>>, %arg16: memref<2x8x32xf32, #tpu.memory_space<vmem>>, %arg17: memref<64x128xf32, #tpu.memory_space<vmem>>, %arg18: memref<64x32xf32, #tpu.memory_space<vmem>>) attributes {dimension_semantics = [#tpu.dimension_semantics<arbitrary>], iteration_bounds = array<i64: 1>, scalar_prefetch = 0 : i64, scratch_operands = 4 : i64, tpu.core_type = #tpu.core_type<tc>, window_params = [{transform_indices = @transform_0, window_bounds = array<i64: 64, 16>}, {pipeline_mode = #tpu.pipeline_mode<synchronous>, transform_indices = @transform_1, window_bounds = array<i64: 2, 8, 32>}, {pipeline_mode = #tpu.pipeline_mode<synchronous>, transform_indices = @transform_2, window_bounds = array<i64: 2, 8, 32>}, {pipeline_mode = #tpu.pipeline_mode<synchronous>, transform_indices = @transform_3, window_bounds = array<i64: 16, 128>}, {pipeline_mode = #tpu.pipeline_mode<synchronous>, transform_indices = @transform_4, window_bounds = array<i64: 32, 128>}, {pipeline_mode = #tpu.pipeline_mode<synchronous>, transform_indices = @transform_5, window_bounds = array<i64: 1, 128>}, {pipeline_mode = #tpu.pipeline_mode<synchronous>, transform_indices = @transform_6, window_bounds = array<i64: 32, 128>}, {pipeline_mode = #tpu.pipeline_mode<synchronous>, transform_indices = @transform_7, window_bounds = array<i64: 32, 128>}, {pipeline_mode = #tpu.pipeline_mode<synchronous>, transform_indices = @transform_8, window_bounds = array<i64: 1, 128>}, {pipeline_mode = #tpu.pipeline_mode<synchronous>, transform_indices = @transform_9, window_bounds = array<i64: 32, 128>}, {pipeline_mode = #tpu.pipeline_mode<synchronous>, transform_indices = @transform_10, window_bounds = array<i64: 1, 128>}, {transform_indices = @transform_11, window_bounds = array<i64: 64, 128>}, {pipeline_mode = #tpu.pipeline_mode<synchronous>, transform_indices = @transform_12, window_bounds = array<i64: 2, 8, 32>}, {pipeline_mode = #tpu.pipeline_mode<synchronous>, transform_indices = @transform_13, window_bounds = array<i64: 2, 8, 32>}]} {
    %c0_i32 = arith.constant 0 : i32
    %0 = arith.cmpi eq, %arg0, %c0_i32 : i32
    %1 = arith.extui %0 : i1 to i32
    %c0_i32_0 = arith.constant 0 : i32
    %2 = arith.cmpi ne, %1, %c0_i32_0 : i32
    scf.if %2 {
      %c0_183 = arith.constant 0 : index
      %c0_184 = arith.constant 0 : index
      %c0_185 = arith.constant 0 : index
      %454 = vector.load %arg2[%c0_183, %c0_184, %c0_185] : memref<2x8x32xf32, #tpu.memory_space<vmem>>, vector<2x8x32xf32>
      %c0_186 = arith.constant 0 : index
      %c0_187 = arith.constant 0 : index
      %c0_188 = arith.constant 0 : index
      %455 = vector.load %arg15[%c0_186, %c0_187, %c0_188] : memref<2x8x32xf32, #tpu.memory_space<vmem>>, vector<2x8x32xf32>
      tpu.vector_store %arg15[%c0_186, %c0_187, %c0_188], %454 {strides = array<i32>} : memref<2x8x32xf32, #tpu.memory_space<vmem>>, vector<2x8x32xf32>,
      %c0_189 = arith.constant 0 : index
      %c0_190 = arith.constant 0 : index
      %c0_191 = arith.constant 0 : index
      %456 = vector.load %arg3[%c0_189, %c0_190, %c0_191] : memref<2x8x32xf32, #tpu.memory_space<vmem>>, vector<2x8x32xf32>
      %c0_192 = arith.constant 0 : index
      %c0_193 = arith.constant 0 : index
      %c0_194 = arith.constant 0 : index
      %457 = vector.load %arg16[%c0_192, %c0_193, %c0_194] : memref<2x8x32xf32, #tpu.memory_space<vmem>>, vector<2x8x32xf32>
      tpu.vector_store %arg16[%c0_192, %c0_193, %c0_194], %456 {strides = array<i32>} : memref<2x8x32xf32, #tpu.memory_space<vmem>>, vector<2x8x32xf32>,
    } else {
    }
    %3 = tpu.iota {dimensions = array<i32: 1>} : vector<8x128xi32>
    %c64_i32 = arith.constant 64 : i32
    %4 = vector.broadcast %c64_i32 : i32 to vector<8x128xi32>
    %5 = arith.cmpi sge, %3, %4 : vector<8x128xi32>
    %c96_i32 = arith.constant 96 : i32
    %6 = vector.broadcast %c96_i32 : i32 to vector<8x128xi32>
    %7 = arith.cmpi slt, %3, %6 : vector<8x128xi32>
    %8 = arith.andi %5, %7 : vector<8x128xi1>
    %c0 = arith.constant 0 : index
    %c0_1 = arith.constant 0 : index
    %9 = vector.load %arg1[%c0, %c0_1] : memref<64x16xf32, #tpu.memory_space<vmem>>, vector<64x16xf32>
    %c0_2 = arith.constant 0 : index
    %c0_3 = arith.constant 0 : index
    %10 = vector.load %arg4[%c0_2, %c0_3] : memref<16x128xf32, #tpu.memory_space<vmem>>, vector<16x128xf32>
    %cst = arith.constant dense<0.000000e+00> : vector<64x128xf32>
    %11 = tpu.matmul %9, %10, %cst {dimension_numbers = #tpu.dot_dimension_numbers<[1], [0], [0], [1], [0, 0, 1, 1], [], []>} : vector<64x16xf32>, vector<16x128xf32>, vector<64x128xf32> -> vector<64x128xf32>
    %c0_4 = arith.constant 0 : index
    %c0_5 = arith.constant 0 : index
    %12 = vector.load %arg6[%c0_4, %c0_5] : memref<1x128xf32, #tpu.memory_space<vmem>>, vector<1x128xf32>
    %13 = vector.broadcast %12 : vector<1x128xf32> to vector<64x128xf32>
    %14 = arith.addf %11, %13 : vector<64x128xf32>
    %c0_6 = arith.constant 0 : index
    %c0_7 = arith.constant 0 : index
    %15 = vector.load %arg17[%c0_6, %c0_7] : memref<64x128xf32, #tpu.memory_space<vmem>>, vector<64x128xf32>
    tpu.vector_store %arg17[%c0_6, %c0_7], %14 {strides = array<i32>} : memref<64x128xf32, #tpu.memory_space<vmem>>, vector<64x128xf32>,
    %c0_8 = arith.constant 0 : index
    %c0_9 = arith.constant 0 : index
    %c0_10 = arith.constant 0 : index
    %16 = vector.load %arg15[%c0_8, %c0_9, %c0_10] : memref<2x8x32xf32, #tpu.memory_space<vmem>>, vector<1x8x32xf32>
    %17 = vector.shape_cast %16 : vector<1x8x32xf32> to vector<8x32xf32>
    %c0_11 = arith.constant 0 : index
    %c0_12 = arith.constant 0 : index
    %c0_13 = arith.constant 0 : index
    %18 = vector.load %arg16[%c0_11, %c0_12, %c0_13] : memref<2x8x32xf32, #tpu.memory_space<vmem>>, vector<1x8x32xf32>
    %19 = vector.shape_cast %18 : vector<1x8x32xf32> to vector<8x32xf32>
    %c0_i32_14 = arith.constant 0 : i32
    %c8_i32 = arith.constant 8 : i32
    %20 = arith.muli %c0_i32_14, %c8_i32 : i32
    %21 = tpu.assume_multiple %20, 8 : i32
    %22 = arith.index_cast %21 : i32 to index
    %c0_15 = arith.constant 0 : index
    %23 = vector.load %arg17[%22, %c0_15] : memref<64x128xf32, #tpu.memory_space<vmem>>, vector<8x128xf32>
    %c0_16 = arith.constant 0 : index
    %c0_17 = arith.constant 0 : index
    %24 = vector.load %arg5[%c0_16, %c0_17] : memref<32x128xf32, #tpu.memory_space<vmem>>, vector<32x128xf32>
    %cst_18 = arith.constant dense<0.000000e+00> : vector<8x128xf32>
    %25 = tpu.matmul %17, %24, %cst_18 {dimension_numbers = #tpu.dot_dimension_numbers<[1], [0], [0], [1], [0, 0, 1, 1], [], []>} : vector<8x32xf32>, vector<32x128xf32>, vector<8x128xf32> -> vector<8x128xf32>
    %26 = arith.addf %23, %25 : vector<8x128xf32>
    %27 = math.tanh %26 : vector<8x128xf32>
    %28 = arith.negf %26 : vector<8x128xf32>
    %29 = math.exp %28 : vector<8x128xf32>
    %cst_19 = arith.constant 1.000000e+00 : f32
    %30 = vector.broadcast %cst_19 : f32 to vector<8x128xf32>
    %31 = arith.addf %30, %29 : vector<8x128xf32>
    %32 = arith.divf %30, %31 : vector<8x128xf32>
    %33 = arith.select %8, %27, %32 : vector<8x128xi1>, vector<8x128xf32>
    %34 = vector.extract_strided_slice %33 {offsets = [0, 0], sizes = [8, 32], strides = [1, 1]} : vector<8x128xf32> to vector<8x32xf32>
    %35 = vector.extract_strided_slice %33 {offsets = [0, 32], sizes = [8, 32], strides = [1, 1]} : vector<8x128xf32> to vector<8x32xf32>
    %36 = vector.extract_strided_slice %33 {offsets = [0, 64], sizes = [8, 32], strides = [1, 1]} : vector<8x128xf32> to vector<8x32xf32>
    %37 = vector.extract_strided_slice %33 {offsets = [0, 96], sizes = [8, 32], strides = [1, 1]} : vector<8x128xf32> to vector<8x32xf32>
    %38 = arith.mulf %35, %19 : vector<8x32xf32>
    %39 = arith.mulf %34, %36 : vector<8x32xf32>
    %40 = arith.addf %38, %39 : vector<8x32xf32>
    %41 = math.tanh %40 : vector<8x32xf32>
    %42 = arith.mulf %37, %41 : vector<8x32xf32>
    %43 = arith.index_cast %21 : i32 to index
    %c0_20 = arith.constant 0 : index
    %44 = vector.load %arg18[%43, %c0_20] : memref<64x32xf32, #tpu.memory_space<vmem>>, vector<8x32xf32>
    tpu.vector_store %arg18[%43, %c0_20], %42 {strides = array<i32>} : memref<64x32xf32, #tpu.memory_space<vmem>>, vector<8x32xf32>,
    %c1_i32 = arith.constant 1 : i32
    %c8_i32_21 = arith.constant 8 : i32
    %45 = arith.muli %c1_i32, %c8_i32_21 : i32
    %46 = tpu.assume_multiple %45, 8 : i32
    %47 = arith.index_cast %46 : i32 to index
    %c0_22 = arith.constant 0 : index
    %48 = vector.load %arg17[%47, %c0_22] : memref<64x128xf32, #tpu.memory_space<vmem>>, vector<8x128xf32>
    %c0_23 = arith.constant 0 : index
    %c0_24 = arith.constant 0 : index
    %49 = vector.load %arg5[%c0_23, %c0_24] : memref<32x128xf32, #tpu.memory_space<vmem>>, vector<32x128xf32>
    %cst_25 = arith.constant dense<0.000000e+00> : vector<8x128xf32>
    %50 = tpu.matmul %42, %49, %cst_25 {dimension_numbers = #tpu.dot_dimension_numbers<[1], [0], [0], [1], [0, 0, 1, 1], [], []>} : vector<8x32xf32>, vector<32x128xf32>, vector<8x128xf32> -> vector<8x128xf32>
    %51 = arith.addf %48, %50 : vector<8x128xf32>
    %52 = math.tanh %51 : vector<8x128xf32>
    %53 = arith.negf %51 : vector<8x128xf32>
    %54 = math.exp %53 : vector<8x128xf32>
    %cst_26 = arith.constant 1.000000e+00 : f32
    %55 = vector.broadcast %cst_26 : f32 to vector<8x128xf32>
    %56 = arith.addf %55, %54 : vector<8x128xf32>
    %57 = arith.divf %55, %56 : vector<8x128xf32>
    %58 = arith.select %8, %52, %57 : vector<8x128xi1>, vector<8x128xf32>
    %59 = vector.extract_strided_slice %58 {offsets = [0, 0], sizes = [8, 32], strides = [1, 1]} : vector<8x128xf32> to vector<8x32xf32>
    %60 = vector.extract_strided_slice %58 {offsets = [0, 32], sizes = [8, 32], strides = [1, 1]} : vector<8x128xf32> to vector<8x32xf32>
    %61 = vector.extract_strided_slice %58 {offsets = [0, 64], sizes = [8, 32], strides = [1, 1]} : vector<8x128xf32> to vector<8x32xf32>
    %62 = vector.extract_strided_slice %58 {offsets = [0, 96], sizes = [8, 32], strides = [1, 1]} : vector<8x128xf32> to vector<8x32xf32>
    %63 = arith.mulf %60, %40 : vector<8x32xf32>
    %64 = arith.mulf %59, %61 : vector<8x32xf32>
    %65 = arith.addf %63, %64 : vector<8x32xf32>
    %66 = math.tanh %65 : vector<8x32xf32>
    %67 = arith.mulf %62, %66 : vector<8x32xf32>
    %68 = arith.index_cast %46 : i32 to index
    %c0_27 = arith.constant 0 : index
    %69 = vector.load %arg18[%68, %c0_27] : memref<64x32xf32, #tpu.memory_space<vmem>>, vector<8x32xf32>
    tpu.vector_store %arg18[%68, %c0_27], %67 {strides = array<i32>} : memref<64x32xf32, #tpu.memory_space<vmem>>, vector<8x32xf32>,
    %c2_i32 = arith.constant 2 : i32
    %c8_i32_28 = arith.constant 8 : i32
    %70 = arith.muli %c2_i32, %c8_i32_28 : i32
    %71 = tpu.assume_multiple %70, 8 : i32
    %72 = arith.index_cast %71 : i32 to index
    %c0_29 = arith.constant 0 : index
    %73 = vector.load %arg17[%72, %c0_29] : memref<64x128xf32, #tpu.memory_space<vmem>>, vector<8x128xf32>
    %c0_30 = arith.constant 0 : index
    %c0_31 = arith.constant 0 : index
    %74 = vector.load %arg5[%c0_30, %c0_31] : memref<32x128xf32, #tpu.memory_space<vmem>>, vector<32x128xf32>
    %cst_32 = arith.constant dense<0.000000e+00> : vector<8x128xf32>
    %75 = tpu.matmul %67, %74, %cst_32 {dimension_numbers = #tpu.dot_dimension_numbers<[1], [0], [0], [1], [0, 0, 1, 1], [], []>} : vector<8x32xf32>, vector<32x128xf32>, vector<8x128xf32> -> vector<8x128xf32>
    %76 = arith.addf %73, %75 : vector<8x128xf32>
    %77 = math.tanh %76 : vector<8x128xf32>
    %78 = arith.negf %76 : vector<8x128xf32>
    %79 = math.exp %78 : vector<8x128xf32>
    %cst_33 = arith.constant 1.000000e+00 : f32
    %80 = vector.broadcast %cst_33 : f32 to vector<8x128xf32>
    %81 = arith.addf %80, %79 : vector<8x128xf32>
    %82 = arith.divf %80, %81 : vector<8x128xf32>
    %83 = arith.select %8, %77, %82 : vector<8x128xi1>, vector<8x128xf32>
    %84 = vector.extract_strided_slice %83 {offsets = [0, 0], sizes = [8, 32], strides = [1, 1]} : vector<8x128xf32> to vector<8x32xf32>
    %85 = vector.extract_strided_slice %83 {offsets = [0, 32], sizes = [8, 32], strides = [1, 1]} : vector<8x128xf32> to vector<8x32xf32>
    %86 = vector.extract_strided_slice %83 {offsets = [0, 64], sizes = [8, 32], strides = [1, 1]} : vector<8x128xf32> to vector<8x32xf32>
    %87 = vector.extract_strided_slice %83 {offsets = [0, 96], sizes = [8, 32], strides = [1, 1]} : vector<8x128xf32> to vector<8x32xf32>
    %88 = arith.mulf %85, %65 : vector<8x32xf32>
    %89 = arith.mulf %84, %86 : vector<8x32xf32>
    %90 = arith.addf %88, %89 : vector<8x32xf32>
    %91 = math.tanh %90 : vector<8x32xf32>
    %92 = arith.mulf %87, %91 : vector<8x32xf32>
    %93 = arith.index_cast %71 : i32 to index
    %c0_34 = arith.constant 0 : index
    %94 = vector.load %arg18[%93, %c0_34] : memref<64x32xf32, #tpu.memory_space<vmem>>, vector<8x32xf32>
    tpu.vector_store %arg18[%93, %c0_34], %92 {strides = array<i32>} : memref<64x32xf32, #tpu.memory_space<vmem>>, vector<8x32xf32>,
    %c3_i32 = arith.constant 3 : i32
    %c8_i32_35 = arith.constant 8 : i32
    %95 = arith.muli %c3_i32, %c8_i32_35 : i32
    %96 = tpu.assume_multiple %95, 8 : i32
    %97 = arith.index_cast %96 : i32 to index
    %c0_36 = arith.constant 0 : index
    %98 = vector.load %arg17[%97, %c0_36] : memref<64x128xf32, #tpu.memory_space<vmem>>, vector<8x128xf32>
    %c0_37 = arith.constant 0 : index
    %c0_38 = arith.constant 0 : index
    %99 = vector.load %arg5[%c0_37, %c0_38] : memref<32x128xf32, #tpu.memory_space<vmem>>, vector<32x128xf32>
    %cst_39 = arith.constant dense<0.000000e+00> : vector<8x128xf32>
    %100 = tpu.matmul %92, %99, %cst_39 {dimension_numbers = #tpu.dot_dimension_numbers<[1], [0], [0], [1], [0, 0, 1, 1], [], []>} : vector<8x32xf32>, vector<32x128xf32>, vector<8x128xf32> -> vector<8x128xf32>
    %101 = arith.addf %98, %100 : vector<8x128xf32>
    %102 = math.tanh %101 : vector<8x128xf32>
    %103 = arith.negf %101 : vector<8x128xf32>
    %104 = math.exp %103 : vector<8x128xf32>
    %cst_40 = arith.constant 1.000000e+00 : f32
    %105 = vector.broadcast %cst_40 : f32 to vector<8x128xf32>
    %106 = arith.addf %105, %104 : vector<8x128xf32>
    %107 = arith.divf %105, %106 : vector<8x128xf32>
    %108 = arith.select %8, %102, %107 : vector<8x128xi1>, vector<8x128xf32>
    %109 = vector.extract_strided_slice %108 {offsets = [0, 0], sizes = [8, 32], strides = [1, 1]} : vector<8x128xf32> to vector<8x32xf32>
    %110 = vector.extract_strided_slice %108 {offsets = [0, 32], sizes = [8, 32], strides = [1, 1]} : vector<8x128xf32> to vector<8x32xf32>
    %111 = vector.extract_strided_slice %108 {offsets = [0, 64], sizes = [8, 32], strides = [1, 1]} : vector<8x128xf32> to vector<8x32xf32>
    %112 = vector.extract_strided_slice %108 {offsets = [0, 96], sizes = [8, 32], strides = [1, 1]} : vector<8x128xf32> to vector<8x32xf32>
    %113 = arith.mulf %110, %90 : vector<8x32xf32>
    %114 = arith.mulf %109, %111 : vector<8x32xf32>
    %115 = arith.addf %113, %114 : vector<8x32xf32>
    %116 = math.tanh %115 : vector<8x32xf32>
    %117 = arith.mulf %112, %116 : vector<8x32xf32>
    %118 = arith.index_cast %96 : i32 to index
    %c0_41 = arith.constant 0 : index
    %119 = vector.load %arg18[%118, %c0_41] : memref<64x32xf32, #tpu.memory_space<vmem>>, vector<8x32xf32>
    tpu.vector_store %arg18[%118, %c0_41], %117 {strides = array<i32>} : memref<64x32xf32, #tpu.memory_space<vmem>>, vector<8x32xf32>,
    %c4_i32 = arith.constant 4 : i32
    %c8_i32_42 = arith.constant 8 : i32
    %120 = arith.muli %c4_i32, %c8_i32_42 : i32
    %121 = tpu.assume_multiple %120, 8 : i32
    %122 = arith.index_cast %121 : i32 to index
    %c0_43 = arith.constant 0 : index
    %123 = vector.load %arg17[%122, %c0_43] : memref<64x128xf32, #tpu.memory_space<vmem>>, vector<8x128xf32>
    %c0_44 = arith.constant 0 : index
    %c0_45 = arith.constant 0 : index
    %124 = vector.load %arg5[%c0_44, %c0_45] : memref<32x128xf32, #tpu.memory_space<vmem>>, vector<32x128xf32>
    %cst_46 = arith.constant dense<0.000000e+00> : vector<8x128xf32>
    %125 = tpu.matmul %117, %124, %cst_46 {dimension_numbers = #tpu.dot_dimension_numbers<[1], [0], [0], [1], [0, 0, 1, 1], [], []>} : vector<8x32xf32>, vector<32x128xf32>, vector<8x128xf32> -> vector<8x128xf32>
    %126 = arith.addf %123, %125 : vector<8x128xf32>
    %127 = math.tanh %126 : vector<8x128xf32>
    %128 = arith.negf %126 : vector<8x128xf32>
    %129 = math.exp %128 : vector<8x128xf32>
    %cst_47 = arith.constant 1.000000e+00 : f32
    %130 = vector.broadcast %cst_47 : f32 to vector<8x128xf32>
    %131 = arith.addf %130, %129 : vector<8x128xf32>
    %132 = arith.divf %130, %131 : vector<8x128xf32>
    %133 = arith.select %8, %127, %132 : vector<8x128xi1>, vector<8x128xf32>
    %134 = vector.extract_strided_slice %133 {offsets = [0, 0], sizes = [8, 32], strides = [1, 1]} : vector<8x128xf32> to vector<8x32xf32>
    %135 = vector.extract_strided_slice %133 {offsets = [0, 32], sizes = [8, 32], strides = [1, 1]} : vector<8x128xf32> to vector<8x32xf32>
    %136 = vector.extract_strided_slice %133 {offsets = [0, 64], sizes = [8, 32], strides = [1, 1]} : vector<8x128xf32> to vector<8x32xf32>
    %137 = vector.extract_strided_slice %133 {offsets = [0, 96], sizes = [8, 32], strides = [1, 1]} : vector<8x128xf32> to vector<8x32xf32>
    %138 = arith.mulf %135, %115 : vector<8x32xf32>
    %139 = arith.mulf %134, %136 : vector<8x32xf32>
    %140 = arith.addf %138, %139 : vector<8x32xf32>
    %141 = math.tanh %140 : vector<8x32xf32>
    %142 = arith.mulf %137, %141 : vector<8x32xf32>
    %143 = arith.index_cast %121 : i32 to index
    %c0_48 = arith.constant 0 : index
    %144 = vector.load %arg18[%143, %c0_48] : memref<64x32xf32, #tpu.memory_space<vmem>>, vector<8x32xf32>
    tpu.vector_store %arg18[%143, %c0_48], %142 {strides = array<i32>} : memref<64x32xf32, #tpu.memory_space<vmem>>, vector<8x32xf32>,
    %c5_i32 = arith.constant 5 : i32
    %c8_i32_49 = arith.constant 8 : i32
    %145 = arith.muli %c5_i32, %c8_i32_49 : i32
    %146 = tpu.assume_multiple %145, 8 : i32
    %147 = arith.index_cast %146 : i32 to index
    %c0_50 = arith.constant 0 : index
    %148 = vector.load %arg17[%147, %c0_50] : memref<64x128xf32, #tpu.memory_space<vmem>>, vector<8x128xf32>
    %c0_51 = arith.constant 0 : index
    %c0_52 = arith.constant 0 : index
    %149 = vector.load %arg5[%c0_51, %c0_52] : memref<32x128xf32, #tpu.memory_space<vmem>>, vector<32x128xf32>
    %cst_53 = arith.constant dense<0.000000e+00> : vector<8x128xf32>
    %150 = tpu.matmul %142, %149, %cst_53 {dimension_numbers = #tpu.dot_dimension_numbers<[1], [0], [0], [1], [0, 0, 1, 1], [], []>} : vector<8x32xf32>, vector<32x128xf32>, vector<8x128xf32> -> vector<8x128xf32>
    %151 = arith.addf %148, %150 : vector<8x128xf32>
    %152 = math.tanh %151 : vector<8x128xf32>
    %153 = arith.negf %151 : vector<8x128xf32>
    %154 = math.exp %153 : vector<8x128xf32>
    %cst_54 = arith.constant 1.000000e+00 : f32
    %155 = vector.broadcast %cst_54 : f32 to vector<8x128xf32>
    %156 = arith.addf %155, %154 : vector<8x128xf32>
    %157 = arith.divf %155, %156 : vector<8x128xf32>
    %158 = arith.select %8, %152, %157 : vector<8x128xi1>, vector<8x128xf32>
    %159 = vector.extract_strided_slice %158 {offsets = [0, 0], sizes = [8, 32], strides = [1, 1]} : vector<8x128xf32> to vector<8x32xf32>
    %160 = vector.extract_strided_slice %158 {offsets = [0, 32], sizes = [8, 32], strides = [1, 1]} : vector<8x128xf32> to vector<8x32xf32>
    %161 = vector.extract_strided_slice %158 {offsets = [0, 64], sizes = [8, 32], strides = [1, 1]} : vector<8x128xf32> to vector<8x32xf32>
    %162 = vector.extract_strided_slice %158 {offsets = [0, 96], sizes = [8, 32], strides = [1, 1]} : vector<8x128xf32> to vector<8x32xf32>
    %163 = arith.mulf %160, %140 : vector<8x32xf32>
    %164 = arith.mulf %159, %161 : vector<8x32xf32>
    %165 = arith.addf %163, %164 : vector<8x32xf32>
    %166 = math.tanh %165 : vector<8x32xf32>
    %167 = arith.mulf %162, %166 : vector<8x32xf32>
    %168 = arith.index_cast %146 : i32 to index
    %c0_55 = arith.constant 0 : index
    %169 = vector.load %arg18[%168, %c0_55] : memref<64x32xf32, #tpu.memory_space<vmem>>, vector<8x32xf32>
    tpu.vector_store %arg18[%168, %c0_55], %167 {strides = array<i32>} : memref<64x32xf32, #tpu.memory_space<vmem>>, vector<8x32xf32>,
    %c6_i32 = arith.constant 6 : i32
    %c8_i32_56 = arith.constant 8 : i32
    %170 = arith.muli %c6_i32, %c8_i32_56 : i32
    %171 = tpu.assume_multiple %170, 8 : i32
    %172 = arith.index_cast %171 : i32 to index
    %c0_57 = arith.constant 0 : index
    %173 = vector.load %arg17[%172, %c0_57] : memref<64x128xf32, #tpu.memory_space<vmem>>, vector<8x128xf32>
    %c0_58 = arith.constant 0 : index
    %c0_59 = arith.constant 0 : index
    %174 = vector.load %arg5[%c0_58, %c0_59] : memref<32x128xf32, #tpu.memory_space<vmem>>, vector<32x128xf32>
    %cst_60 = arith.constant dense<0.000000e+00> : vector<8x128xf32>
    %175 = tpu.matmul %167, %174, %cst_60 {dimension_numbers = #tpu.dot_dimension_numbers<[1], [0], [0], [1], [0, 0, 1, 1], [], []>} : vector<8x32xf32>, vector<32x128xf32>, vector<8x128xf32> -> vector<8x128xf32>
    %176 = arith.addf %173, %175 : vector<8x128xf32>
    %177 = math.tanh %176 : vector<8x128xf32>
    %178 = arith.negf %176 : vector<8x128xf32>
    %179 = math.exp %178 : vector<8x128xf32>
    %cst_61 = arith.constant 1.000000e+00 : f32
    %180 = vector.broadcast %cst_61 : f32 to vector<8x128xf32>
    %181 = arith.addf %180, %179 : vector<8x128xf32>
    %182 = arith.divf %180, %181 : vector<8x128xf32>
    %183 = arith.select %8, %177, %182 : vector<8x128xi1>, vector<8x128xf32>
    %184 = vector.extract_strided_slice %183 {offsets = [0, 0], sizes = [8, 32], strides = [1, 1]} : vector<8x128xf32> to vector<8x32xf32>
    %185 = vector.extract_strided_slice %183 {offsets = [0, 32], sizes = [8, 32], strides = [1, 1]} : vector<8x128xf32> to vector<8x32xf32>
    %186 = vector.extract_strided_slice %183 {offsets = [0, 64], sizes = [8, 32], strides = [1, 1]} : vector<8x128xf32> to vector<8x32xf32>
    %187 = vector.extract_strided_slice %183 {offsets = [0, 96], sizes = [8, 32], strides = [1, 1]} : vector<8x128xf32> to vector<8x32xf32>
    %188 = arith.mulf %185, %165 : vector<8x32xf32>
    %189 = arith.mulf %184, %186 : vector<8x32xf32>
    %190 = arith.addf %188, %189 : vector<8x32xf32>
    %191 = math.tanh %190 : vector<8x32xf32>
    %192 = arith.mulf %187, %191 : vector<8x32xf32>
    %193 = arith.index_cast %171 : i32 to index
    %c0_62 = arith.constant 0 : index
    %194 = vector.load %arg18[%193, %c0_62] : memref<64x32xf32, #tpu.memory_space<vmem>>, vector<8x32xf32>
    tpu.vector_store %arg18[%193, %c0_62], %192 {strides = array<i32>} : memref<64x32xf32, #tpu.memory_space<vmem>>, vector<8x32xf32>,
    %c7_i32 = arith.constant 7 : i32
    %c8_i32_63 = arith.constant 8 : i32
    %195 = arith.muli %c7_i32, %c8_i32_63 : i32
    %196 = tpu.assume_multiple %195, 8 : i32
    %197 = arith.index_cast %196 : i32 to index
    %c0_64 = arith.constant 0 : index
    %198 = vector.load %arg17[%197, %c0_64] : memref<64x128xf32, #tpu.memory_space<vmem>>, vector<8x128xf32>
    %c0_65 = arith.constant 0 : index
    %c0_66 = arith.constant 0 : index
    %199 = vector.load %arg5[%c0_65, %c0_66] : memref<32x128xf32, #tpu.memory_space<vmem>>, vector<32x128xf32>
    %cst_67 = arith.constant dense<0.000000e+00> : vector<8x128xf32>
    %200 = tpu.matmul %192, %199, %cst_67 {dimension_numbers = #tpu.dot_dimension_numbers<[1], [0], [0], [1], [0, 0, 1, 1], [], []>} : vector<8x32xf32>, vector<32x128xf32>, vector<8x128xf32> -> vector<8x128xf32>
    %201 = arith.addf %198, %200 : vector<8x128xf32>
    %202 = math.tanh %201 : vector<8x128xf32>
    %203 = arith.negf %201 : vector<8x128xf32>
    %204 = math.exp %203 : vector<8x128xf32>
    %cst_68 = arith.constant 1.000000e+00 : f32
    %205 = vector.broadcast %cst_68 : f32 to vector<8x128xf32>
    %206 = arith.addf %205, %204 : vector<8x128xf32>
    %207 = arith.divf %205, %206 : vector<8x128xf32>
    %208 = arith.select %8, %202, %207 : vector<8x128xi1>, vector<8x128xf32>
    %209 = vector.extract_strided_slice %208 {offsets = [0, 0], sizes = [8, 32], strides = [1, 1]} : vector<8x128xf32> to vector<8x32xf32>
    %210 = vector.extract_strided_slice %208 {offsets = [0, 32], sizes = [8, 32], strides = [1, 1]} : vector<8x128xf32> to vector<8x32xf32>
    %211 = vector.extract_strided_slice %208 {offsets = [0, 64], sizes = [8, 32], strides = [1, 1]} : vector<8x128xf32> to vector<8x32xf32>
    %212 = vector.extract_strided_slice %208 {offsets = [0, 96], sizes = [8, 32], strides = [1, 1]} : vector<8x128xf32> to vector<8x32xf32>
    %213 = arith.mulf %210, %190 : vector<8x32xf32>
    %214 = arith.mulf %209, %211 : vector<8x32xf32>
    %215 = arith.addf %213, %214 : vector<8x32xf32>
    %216 = math.tanh %215 : vector<8x32xf32>
    %217 = arith.mulf %212, %216 : vector<8x32xf32>
    %218 = arith.index_cast %196 : i32 to index
    %c0_69 = arith.constant 0 : index
    %219 = vector.load %arg18[%218, %c0_69] : memref<64x32xf32, #tpu.memory_space<vmem>>, vector<8x32xf32>
    tpu.vector_store %arg18[%218, %c0_69], %217 {strides = array<i32>} : memref<64x32xf32, #tpu.memory_space<vmem>>, vector<8x32xf32>,
    %c8_i32_70 = arith.constant 8 : i32
    %c0_71 = arith.constant 0 : index
    %c0_72 = arith.constant 0 : index
    %c0_73 = arith.constant 0 : index
    %220 = vector.load %arg15[%c0_71, %c0_72, %c0_73] : memref<2x8x32xf32, #tpu.memory_space<vmem>>, vector<1x8x32xf32>
    %221 = vector.shape_cast %220 : vector<1x8x32xf32> to vector<8x32xf32>
    %222 = vector.shape_cast %217 : vector<8x32xf32> to vector<1x8x32xf32>
    tpu.vector_store %arg15[%c0_71, %c0_72, %c0_73], %222 {strides = array<i32>} : memref<2x8x32xf32, #tpu.memory_space<vmem>>, vector<1x8x32xf32>,
    %c0_74 = arith.constant 0 : index
    %c0_75 = arith.constant 0 : index
    %c0_76 = arith.constant 0 : index
    %223 = vector.load %arg16[%c0_74, %c0_75, %c0_76] : memref<2x8x32xf32, #tpu.memory_space<vmem>>, vector<1x8x32xf32>
    %224 = vector.shape_cast %223 : vector<1x8x32xf32> to vector<8x32xf32>
    %225 = vector.shape_cast %215 : vector<8x32xf32> to vector<1x8x32xf32>
    tpu.vector_store %arg16[%c0_74, %c0_75, %c0_76], %225 {strides = array<i32>} : memref<2x8x32xf32, #tpu.memory_space<vmem>>, vector<1x8x32xf32>,
    %c0_77 = arith.constant 0 : index
    %c0_78 = arith.constant 0 : index
    %226 = vector.load %arg18[%c0_77, %c0_78] : memref<64x32xf32, #tpu.memory_space<vmem>>, vector<64x32xf32>
    %c0_79 = arith.constant 0 : index
    %c0_80 = arith.constant 0 : index
    %227 = vector.load %arg7[%c0_79, %c0_80] : memref<32x128xf32, #tpu.memory_space<vmem>>, vector<32x128xf32>
    %cst_81 = arith.constant dense<0.000000e+00> : vector<64x128xf32>
    %228 = tpu.matmul %226, %227, %cst_81 {dimension_numbers = #tpu.dot_dimension_numbers<[1], [0], [0], [1], [0, 0, 1, 1], [], []>} : vector<64x32xf32>, vector<32x128xf32>, vector<64x128xf32> -> vector<64x128xf32>
    %c0_82 = arith.constant 0 : index
    %c0_83 = arith.constant 0 : index
    %229 = vector.load %arg9[%c0_82, %c0_83] : memref<1x128xf32, #tpu.memory_space<vmem>>, vector<1x128xf32>
    %230 = vector.broadcast %229 : vector<1x128xf32> to vector<64x128xf32>
    %231 = arith.addf %228, %230 : vector<64x128xf32>
    %c0_84 = arith.constant 0 : index
    %c0_85 = arith.constant 0 : index
    %232 = vector.load %arg17[%c0_84, %c0_85] : memref<64x128xf32, #tpu.memory_space<vmem>>, vector<64x128xf32>
    tpu.vector_store %arg17[%c0_84, %c0_85], %231 {strides = array<i32>} : memref<64x128xf32, #tpu.memory_space<vmem>>, vector<64x128xf32>,
    %c1 = arith.constant 1 : index
    %c0_86 = arith.constant 0 : index
    %c0_87 = arith.constant 0 : index
    %233 = vector.load %arg15[%c1, %c0_86, %c0_87] : memref<2x8x32xf32, #tpu.memory_space<vmem>>, vector<1x8x32xf32>
    %234 = vector.shape_cast %233 : vector<1x8x32xf32> to vector<8x32xf32>
    %c1_88 = arith.constant 1 : index
    %c0_89 = arith.constant 0 : index
    %c0_90 = arith.constant 0 : index
    %235 = vector.load %arg16[%c1_88, %c0_89, %c0_90] : memref<2x8x32xf32, #tpu.memory_space<vmem>>, vector<1x8x32xf32>
    %236 = vector.shape_cast %235 : vector<1x8x32xf32> to vector<8x32xf32>
    %c0_i32_91 = arith.constant 0 : i32
    %c8_i32_92 = arith.constant 8 : i32
    %237 = arith.muli %c0_i32_91, %c8_i32_92 : i32
    %238 = tpu.assume_multiple %237, 8 : i32
    %239 = arith.index_cast %238 : i32 to index
    %c0_93 = arith.constant 0 : index
    %240 = vector.load %arg17[%239, %c0_93] : memref<64x128xf32, #tpu.memory_space<vmem>>, vector<8x128xf32>
    %c0_94 = arith.constant 0 : index
    %c0_95 = arith.constant 0 : index
    %241 = vector.load %arg8[%c0_94, %c0_95] : memref<32x128xf32, #tpu.memory_space<vmem>>, vector<32x128xf32>
    %cst_96 = arith.constant dense<0.000000e+00> : vector<8x128xf32>
    %242 = tpu.matmul %234, %241, %cst_96 {dimension_numbers = #tpu.dot_dimension_numbers<[1], [0], [0], [1], [0, 0, 1, 1], [], []>} : vector<8x32xf32>, vector<32x128xf32>, vector<8x128xf32> -> vector<8x128xf32>
    %243 = arith.addf %240, %242 : vector<8x128xf32>
    %244 = math.tanh %243 : vector<8x128xf32>
    %245 = arith.negf %243 : vector<8x128xf32>
    %246 = math.exp %245 : vector<8x128xf32>
    %cst_97 = arith.constant 1.000000e+00 : f32
    %247 = vector.broadcast %cst_97 : f32 to vector<8x128xf32>
    %248 = arith.addf %247, %246 : vector<8x128xf32>
    %249 = arith.divf %247, %248 : vector<8x128xf32>
    %250 = arith.select %8, %244, %249 : vector<8x128xi1>, vector<8x128xf32>
    %251 = vector.extract_strided_slice %250 {offsets = [0, 0], sizes = [8, 32], strides = [1, 1]} : vector<8x128xf32> to vector<8x32xf32>
    %252 = vector.extract_strided_slice %250 {offsets = [0, 32], sizes = [8, 32], strides = [1, 1]} : vector<8x128xf32> to vector<8x32xf32>
    %253 = vector.extract_strided_slice %250 {offsets = [0, 64], sizes = [8, 32], strides = [1, 1]} : vector<8x128xf32> to vector<8x32xf32>
    %254 = vector.extract_strided_slice %250 {offsets = [0, 96], sizes = [8, 32], strides = [1, 1]} : vector<8x128xf32> to vector<8x32xf32>
    %255 = arith.mulf %252, %236 : vector<8x32xf32>
    %256 = arith.mulf %251, %253 : vector<8x32xf32>
    %257 = arith.addf %255, %256 : vector<8x32xf32>
    %258 = math.tanh %257 : vector<8x32xf32>
    %259 = arith.mulf %254, %258 : vector<8x32xf32>
    %260 = arith.index_cast %238 : i32 to index
    %c0_98 = arith.constant 0 : index
    %261 = vector.load %arg18[%260, %c0_98] : memref<64x32xf32, #tpu.memory_space<vmem>>, vector<8x32xf32>
    tpu.vector_store %arg18[%260, %c0_98], %259 {strides = array<i32>} : memref<64x32xf32, #tpu.memory_space<vmem>>, vector<8x32xf32>,
    %c1_i32_99 = arith.constant 1 : i32
    %c8_i32_100 = arith.constant 8 : i32
    %262 = arith.muli %c1_i32_99, %c8_i32_100 : i32
    %263 = tpu.assume_multiple %262, 8 : i32
    %264 = arith.index_cast %263 : i32 to index
    %c0_101 = arith.constant 0 : index
    %265 = vector.load %arg17[%264, %c0_101] : memref<64x128xf32, #tpu.memory_space<vmem>>, vector<8x128xf32>
    %c0_102 = arith.constant 0 : index
    %c0_103 = arith.constant 0 : index
    %266 = vector.load %arg8[%c0_102, %c0_103] : memref<32x128xf32, #tpu.memory_space<vmem>>, vector<32x128xf32>
    %cst_104 = arith.constant dense<0.000000e+00> : vector<8x128xf32>
    %267 = tpu.matmul %259, %266, %cst_104 {dimension_numbers = #tpu.dot_dimension_numbers<[1], [0], [0], [1], [0, 0, 1, 1], [], []>} : vector<8x32xf32>, vector<32x128xf32>, vector<8x128xf32> -> vector<8x128xf32>
    %268 = arith.addf %265, %267 : vector<8x128xf32>
    %269 = math.tanh %268 : vector<8x128xf32>
    %270 = arith.negf %268 : vector<8x128xf32>
    %271 = math.exp %270 : vector<8x128xf32>
    %cst_105 = arith.constant 1.000000e+00 : f32
    %272 = vector.broadcast %cst_105 : f32 to vector<8x128xf32>
    %273 = arith.addf %272, %271 : vector<8x128xf32>
    %274 = arith.divf %272, %273 : vector<8x128xf32>
    %275 = arith.select %8, %269, %274 : vector<8x128xi1>, vector<8x128xf32>
    %276 = vector.extract_strided_slice %275 {offsets = [0, 0], sizes = [8, 32], strides = [1, 1]} : vector<8x128xf32> to vector<8x32xf32>
    %277 = vector.extract_strided_slice %275 {offsets = [0, 32], sizes = [8, 32], strides = [1, 1]} : vector<8x128xf32> to vector<8x32xf32>
    %278 = vector.extract_strided_slice %275 {offsets = [0, 64], sizes = [8, 32], strides = [1, 1]} : vector<8x128xf32> to vector<8x32xf32>
    %279 = vector.extract_strided_slice %275 {offsets = [0, 96], sizes = [8, 32], strides = [1, 1]} : vector<8x128xf32> to vector<8x32xf32>
    %280 = arith.mulf %277, %257 : vector<8x32xf32>
    %281 = arith.mulf %276, %278 : vector<8x32xf32>
    %282 = arith.addf %280, %281 : vector<8x32xf32>
    %283 = math.tanh %282 : vector<8x32xf32>
    %284 = arith.mulf %279, %283 : vector<8x32xf32>
    %285 = arith.index_cast %263 : i32 to index
    %c0_106 = arith.constant 0 : index
    %286 = vector.load %arg18[%285, %c0_106] : memref<64x32xf32, #tpu.memory_space<vmem>>, vector<8x32xf32>
    tpu.vector_store %arg18[%285, %c0_106], %284 {strides = array<i32>} : memref<64x32xf32, #tpu.memory_space<vmem>>, vector<8x32xf32>,
    %c2_i32_107 = arith.constant 2 : i32
    %c8_i32_108 = arith.constant 8 : i32
    %287 = arith.muli %c2_i32_107, %c8_i32_108 : i32
    %288 = tpu.assume_multiple %287, 8 : i32
    %289 = arith.index_cast %288 : i32 to index
    %c0_109 = arith.constant 0 : index
    %290 = vector.load %arg17[%289, %c0_109] : memref<64x128xf32, #tpu.memory_space<vmem>>, vector<8x128xf32>
    %c0_110 = arith.constant 0 : index
    %c0_111 = arith.constant 0 : index
    %291 = vector.load %arg8[%c0_110, %c0_111] : memref<32x128xf32, #tpu.memory_space<vmem>>, vector<32x128xf32>
    %cst_112 = arith.constant dense<0.000000e+00> : vector<8x128xf32>
    %292 = tpu.matmul %284, %291, %cst_112 {dimension_numbers = #tpu.dot_dimension_numbers<[1], [0], [0], [1], [0, 0, 1, 1], [], []>} : vector<8x32xf32>, vector<32x128xf32>, vector<8x128xf32> -> vector<8x128xf32>
    %293 = arith.addf %290, %292 : vector<8x128xf32>
    %294 = math.tanh %293 : vector<8x128xf32>
    %295 = arith.negf %293 : vector<8x128xf32>
    %296 = math.exp %295 : vector<8x128xf32>
    %cst_113 = arith.constant 1.000000e+00 : f32
    %297 = vector.broadcast %cst_113 : f32 to vector<8x128xf32>
    %298 = arith.addf %297, %296 : vector<8x128xf32>
    %299 = arith.divf %297, %298 : vector<8x128xf32>
    %300 = arith.select %8, %294, %299 : vector<8x128xi1>, vector<8x128xf32>
    %301 = vector.extract_strided_slice %300 {offsets = [0, 0], sizes = [8, 32], strides = [1, 1]} : vector<8x128xf32> to vector<8x32xf32>
    %302 = vector.extract_strided_slice %300 {offsets = [0, 32], sizes = [8, 32], strides = [1, 1]} : vector<8x128xf32> to vector<8x32xf32>
    %303 = vector.extract_strided_slice %300 {offsets = [0, 64], sizes = [8, 32], strides = [1, 1]} : vector<8x128xf32> to vector<8x32xf32>
    %304 = vector.extract_strided_slice %300 {offsets = [0, 96], sizes = [8, 32], strides = [1, 1]} : vector<8x128xf32> to vector<8x32xf32>
    %305 = arith.mulf %302, %282 : vector<8x32xf32>
    %306 = arith.mulf %301, %303 : vector<8x32xf32>
    %307 = arith.addf %305, %306 : vector<8x32xf32>
    %308 = math.tanh %307 : vector<8x32xf32>
    %309 = arith.mulf %304, %308 : vector<8x32xf32>
    %310 = arith.index_cast %288 : i32 to index
    %c0_114 = arith.constant 0 : index
    %311 = vector.load %arg18[%310, %c0_114] : memref<64x32xf32, #tpu.memory_space<vmem>>, vector<8x32xf32>
    tpu.vector_store %arg18[%310, %c0_114], %309 {strides = array<i32>} : memref<64x32xf32, #tpu.memory_space<vmem>>, vector<8x32xf32>,
    %c3_i32_115 = arith.constant 3 : i32
    %c8_i32_116 = arith.constant 8 : i32
    %312 = arith.muli %c3_i32_115, %c8_i32_116 : i32
    %313 = tpu.assume_multiple %312, 8 : i32
    %314 = arith.index_cast %313 : i32 to index
    %c0_117 = arith.constant 0 : index
    %315 = vector.load %arg17[%314, %c0_117] : memref<64x128xf32, #tpu.memory_space<vmem>>, vector<8x128xf32>
    %c0_118 = arith.constant 0 : index
    %c0_119 = arith.constant 0 : index
    %316 = vector.load %arg8[%c0_118, %c0_119] : memref<32x128xf32, #tpu.memory_space<vmem>>, vector<32x128xf32>
    %cst_120 = arith.constant dense<0.000000e+00> : vector<8x128xf32>
    %317 = tpu.matmul %309, %316, %cst_120 {dimension_numbers = #tpu.dot_dimension_numbers<[1], [0], [0], [1], [0, 0, 1, 1], [], []>} : vector<8x32xf32>, vector<32x128xf32>, vector<8x128xf32> -> vector<8x128xf32>
    %318 = arith.addf %315, %317 : vector<8x128xf32>
    %319 = math.tanh %318 : vector<8x128xf32>
    %320 = arith.negf %318 : vector<8x128xf32>
    %321 = math.exp %320 : vector<8x128xf32>
    %cst_121 = arith.constant 1.000000e+00 : f32
    %322 = vector.broadcast %cst_121 : f32 to vector<8x128xf32>
    %323 = arith.addf %322, %321 : vector<8x128xf32>
    %324 = arith.divf %322, %323 : vector<8x128xf32>
    %325 = arith.select %8, %319, %324 : vector<8x128xi1>, vector<8x128xf32>
    %326 = vector.extract_strided_slice %325 {offsets = [0, 0], sizes = [8, 32], strides = [1, 1]} : vector<8x128xf32> to vector<8x32xf32>
    %327 = vector.extract_strided_slice %325 {offsets = [0, 32], sizes = [8, 32], strides = [1, 1]} : vector<8x128xf32> to vector<8x32xf32>
    %328 = vector.extract_strided_slice %325 {offsets = [0, 64], sizes = [8, 32], strides = [1, 1]} : vector<8x128xf32> to vector<8x32xf32>
    %329 = vector.extract_strided_slice %325 {offsets = [0, 96], sizes = [8, 32], strides = [1, 1]} : vector<8x128xf32> to vector<8x32xf32>
    %330 = arith.mulf %327, %307 : vector<8x32xf32>
    %331 = arith.mulf %326, %328 : vector<8x32xf32>
    %332 = arith.addf %330, %331 : vector<8x32xf32>
    %333 = math.tanh %332 : vector<8x32xf32>
    %334 = arith.mulf %329, %333 : vector<8x32xf32>
    %335 = arith.index_cast %313 : i32 to index
    %c0_122 = arith.constant 0 : index
    %336 = vector.load %arg18[%335, %c0_122] : memref<64x32xf32, #tpu.memory_space<vmem>>, vector<8x32xf32>
    tpu.vector_store %arg18[%335, %c0_122], %334 {strides = array<i32>} : memref<64x32xf32, #tpu.memory_space<vmem>>, vector<8x32xf32>,
    %c4_i32_123 = arith.constant 4 : i32
    %c8_i32_124 = arith.constant 8 : i32
    %337 = arith.muli %c4_i32_123, %c8_i32_124 : i32
    %338 = tpu.assume_multiple %337, 8 : i32
    %339 = arith.index_cast %338 : i32 to index
    %c0_125 = arith.constant 0 : index
    %340 = vector.load %arg17[%339, %c0_125] : memref<64x128xf32, #tpu.memory_space<vmem>>, vector<8x128xf32>
    %c0_126 = arith.constant 0 : index
    %c0_127 = arith.constant 0 : index
    %341 = vector.load %arg8[%c0_126, %c0_127] : memref<32x128xf32, #tpu.memory_space<vmem>>, vector<32x128xf32>
    %cst_128 = arith.constant dense<0.000000e+00> : vector<8x128xf32>
    %342 = tpu.matmul %334, %341, %cst_128 {dimension_numbers = #tpu.dot_dimension_numbers<[1], [0], [0], [1], [0, 0, 1, 1], [], []>} : vector<8x32xf32>, vector<32x128xf32>, vector<8x128xf32> -> vector<8x128xf32>
    %343 = arith.addf %340, %342 : vector<8x128xf32>
    %344 = math.tanh %343 : vector<8x128xf32>
    %345 = arith.negf %343 : vector<8x128xf32>
    %346 = math.exp %345 : vector<8x128xf32>
    %cst_129 = arith.constant 1.000000e+00 : f32
    %347 = vector.broadcast %cst_129 : f32 to vector<8x128xf32>
    %348 = arith.addf %347, %346 : vector<8x128xf32>
    %349 = arith.divf %347, %348 : vector<8x128xf32>
    %350 = arith.select %8, %344, %349 : vector<8x128xi1>, vector<8x128xf32>
    %351 = vector.extract_strided_slice %350 {offsets = [0, 0], sizes = [8, 32], strides = [1, 1]} : vector<8x128xf32> to vector<8x32xf32>
    %352 = vector.extract_strided_slice %350 {offsets = [0, 32], sizes = [8, 32], strides = [1, 1]} : vector<8x128xf32> to vector<8x32xf32>
    %353 = vector.extract_strided_slice %350 {offsets = [0, 64], sizes = [8, 32], strides = [1, 1]} : vector<8x128xf32> to vector<8x32xf32>
    %354 = vector.extract_strided_slice %350 {offsets = [0, 96], sizes = [8, 32], strides = [1, 1]} : vector<8x128xf32> to vector<8x32xf32>
    %355 = arith.mulf %352, %332 : vector<8x32xf32>
    %356 = arith.mulf %351, %353 : vector<8x32xf32>
    %357 = arith.addf %355, %356 : vector<8x32xf32>
    %358 = math.tanh %357 : vector<8x32xf32>
    %359 = arith.mulf %354, %358 : vector<8x32xf32>
    %360 = arith.index_cast %338 : i32 to index
    %c0_130 = arith.constant 0 : index
    %361 = vector.load %arg18[%360, %c0_130] : memref<64x32xf32, #tpu.memory_space<vmem>>, vector<8x32xf32>
    tpu.vector_store %arg18[%360, %c0_130], %359 {strides = array<i32>} : memref<64x32xf32, #tpu.memory_space<vmem>>, vector<8x32xf32>,
    %c5_i32_131 = arith.constant 5 : i32
    %c8_i32_132 = arith.constant 8 : i32
    %362 = arith.muli %c5_i32_131, %c8_i32_132 : i32
    %363 = tpu.assume_multiple %362, 8 : i32
    %364 = arith.index_cast %363 : i32 to index
    %c0_133 = arith.constant 0 : index
    %365 = vector.load %arg17[%364, %c0_133] : memref<64x128xf32, #tpu.memory_space<vmem>>, vector<8x128xf32>
    %c0_134 = arith.constant 0 : index
    %c0_135 = arith.constant 0 : index
    %366 = vector.load %arg8[%c0_134, %c0_135] : memref<32x128xf32, #tpu.memory_space<vmem>>, vector<32x128xf32>
    %cst_136 = arith.constant dense<0.000000e+00> : vector<8x128xf32>
    %367 = tpu.matmul %359, %366, %cst_136 {dimension_numbers = #tpu.dot_dimension_numbers<[1], [0], [0], [1], [0, 0, 1, 1], [], []>} : vector<8x32xf32>, vector<32x128xf32>, vector<8x128xf32> -> vector<8x128xf32>
    %368 = arith.addf %365, %367 : vector<8x128xf32>
    %369 = math.tanh %368 : vector<8x128xf32>
    %370 = arith.negf %368 : vector<8x128xf32>
    %371 = math.exp %370 : vector<8x128xf32>
    %cst_137 = arith.constant 1.000000e+00 : f32
    %372 = vector.broadcast %cst_137 : f32 to vector<8x128xf32>
    %373 = arith.addf %372, %371 : vector<8x128xf32>
    %374 = arith.divf %372, %373 : vector<8x128xf32>
    %375 = arith.select %8, %369, %374 : vector<8x128xi1>, vector<8x128xf32>
    %376 = vector.extract_strided_slice %375 {offsets = [0, 0], sizes = [8, 32], strides = [1, 1]} : vector<8x128xf32> to vector<8x32xf32>
    %377 = vector.extract_strided_slice %375 {offsets = [0, 32], sizes = [8, 32], strides = [1, 1]} : vector<8x128xf32> to vector<8x32xf32>
    %378 = vector.extract_strided_slice %375 {offsets = [0, 64], sizes = [8, 32], strides = [1, 1]} : vector<8x128xf32> to vector<8x32xf32>
    %379 = vector.extract_strided_slice %375 {offsets = [0, 96], sizes = [8, 32], strides = [1, 1]} : vector<8x128xf32> to vector<8x32xf32>
    %380 = arith.mulf %377, %357 : vector<8x32xf32>
    %381 = arith.mulf %376, %378 : vector<8x32xf32>
    %382 = arith.addf %380, %381 : vector<8x32xf32>
    %383 = math.tanh %382 : vector<8x32xf32>
    %384 = arith.mulf %379, %383 : vector<8x32xf32>
    %385 = arith.index_cast %363 : i32 to index
    %c0_138 = arith.constant 0 : index
    %386 = vector.load %arg18[%385, %c0_138] : memref<64x32xf32, #tpu.memory_space<vmem>>, vector<8x32xf32>
    tpu.vector_store %arg18[%385, %c0_138], %384 {strides = array<i32>} : memref<64x32xf32, #tpu.memory_space<vmem>>, vector<8x32xf32>,
    %c6_i32_139 = arith.constant 6 : i32
    %c8_i32_140 = arith.constant 8 : i32
    %387 = arith.muli %c6_i32_139, %c8_i32_140 : i32
    %388 = tpu.assume_multiple %387, 8 : i32
    %389 = arith.index_cast %388 : i32 to index
    %c0_141 = arith.constant 0 : index
    %390 = vector.load %arg17[%389, %c0_141] : memref<64x128xf32, #tpu.memory_space<vmem>>, vector<8x128xf32>
    %c0_142 = arith.constant 0 : index
    %c0_143 = arith.constant 0 : index
    %391 = vector.load %arg8[%c0_142, %c0_143] : memref<32x128xf32, #tpu.memory_space<vmem>>, vector<32x128xf32>
    %cst_144 = arith.constant dense<0.000000e+00> : vector<8x128xf32>
    %392 = tpu.matmul %384, %391, %cst_144 {dimension_numbers = #tpu.dot_dimension_numbers<[1], [0], [0], [1], [0, 0, 1, 1], [], []>} : vector<8x32xf32>, vector<32x128xf32>, vector<8x128xf32> -> vector<8x128xf32>
    %393 = arith.addf %390, %392 : vector<8x128xf32>
    %394 = math.tanh %393 : vector<8x128xf32>
    %395 = arith.negf %393 : vector<8x128xf32>
    %396 = math.exp %395 : vector<8x128xf32>
    %cst_145 = arith.constant 1.000000e+00 : f32
    %397 = vector.broadcast %cst_145 : f32 to vector<8x128xf32>
    %398 = arith.addf %397, %396 : vector<8x128xf32>
    %399 = arith.divf %397, %398 : vector<8x128xf32>
    %400 = arith.select %8, %394, %399 : vector<8x128xi1>, vector<8x128xf32>
    %401 = vector.extract_strided_slice %400 {offsets = [0, 0], sizes = [8, 32], strides = [1, 1]} : vector<8x128xf32> to vector<8x32xf32>
    %402 = vector.extract_strided_slice %400 {offsets = [0, 32], sizes = [8, 32], strides = [1, 1]} : vector<8x128xf32> to vector<8x32xf32>
    %403 = vector.extract_strided_slice %400 {offsets = [0, 64], sizes = [8, 32], strides = [1, 1]} : vector<8x128xf32> to vector<8x32xf32>
    %404 = vector.extract_strided_slice %400 {offsets = [0, 96], sizes = [8, 32], strides = [1, 1]} : vector<8x128xf32> to vector<8x32xf32>
    %405 = arith.mulf %402, %382 : vector<8x32xf32>
    %406 = arith.mulf %401, %403 : vector<8x32xf32>
    %407 = arith.addf %405, %406 : vector<8x32xf32>
    %408 = math.tanh %407 : vector<8x32xf32>
    %409 = arith.mulf %404, %408 : vector<8x32xf32>
    %410 = arith.index_cast %388 : i32 to index
    %c0_146 = arith.constant 0 : index
    %411 = vector.load %arg18[%410, %c0_146] : memref<64x32xf32, #tpu.memory_space<vmem>>, vector<8x32xf32>
    tpu.vector_store %arg18[%410, %c0_146], %409 {strides = array<i32>} : memref<64x32xf32, #tpu.memory_space<vmem>>, vector<8x32xf32>,
    %c7_i32_147 = arith.constant 7 : i32
    %c8_i32_148 = arith.constant 8 : i32
    %412 = arith.muli %c7_i32_147, %c8_i32_148 : i32
    %413 = tpu.assume_multiple %412, 8 : i32
    %414 = arith.index_cast %413 : i32 to index
    %c0_149 = arith.constant 0 : index
    %415 = vector.load %arg17[%414, %c0_149] : memref<64x128xf32, #tpu.memory_space<vmem>>, vector<8x128xf32>
    %c0_150 = arith.constant 0 : index
    %c0_151 = arith.constant 0 : index
    %416 = vector.load %arg8[%c0_150, %c0_151] : memref<32x128xf32, #tpu.memory_space<vmem>>, vector<32x128xf32>
    %cst_152 = arith.constant dense<0.000000e+00> : vector<8x128xf32>
    %417 = tpu.matmul %409, %416, %cst_152 {dimension_numbers = #tpu.dot_dimension_numbers<[1], [0], [0], [1], [0, 0, 1, 1], [], []>} : vector<8x32xf32>, vector<32x128xf32>, vector<8x128xf32> -> vector<8x128xf32>
    %418 = arith.addf %415, %417 : vector<8x128xf32>
    %419 = math.tanh %418 : vector<8x128xf32>
    %420 = arith.negf %418 : vector<8x128xf32>
    %421 = math.exp %420 : vector<8x128xf32>
    %cst_153 = arith.constant 1.000000e+00 : f32
    %422 = vector.broadcast %cst_153 : f32 to vector<8x128xf32>
    %423 = arith.addf %422, %421 : vector<8x128xf32>
    %424 = arith.divf %422, %423 : vector<8x128xf32>
    %425 = arith.select %8, %419, %424 : vector<8x128xi1>, vector<8x128xf32>
    %426 = vector.extract_strided_slice %425 {offsets = [0, 0], sizes = [8, 32], strides = [1, 1]} : vector<8x128xf32> to vector<8x32xf32>
    %427 = vector.extract_strided_slice %425 {offsets = [0, 32], sizes = [8, 32], strides = [1, 1]} : vector<8x128xf32> to vector<8x32xf32>
    %428 = vector.extract_strided_slice %425 {offsets = [0, 64], sizes = [8, 32], strides = [1, 1]} : vector<8x128xf32> to vector<8x32xf32>
    %429 = vector.extract_strided_slice %425 {offsets = [0, 96], sizes = [8, 32], strides = [1, 1]} : vector<8x128xf32> to vector<8x32xf32>
    %430 = arith.mulf %427, %407 : vector<8x32xf32>
    %431 = arith.mulf %426, %428 : vector<8x32xf32>
    %432 = arith.addf %430, %431 : vector<8x32xf32>
    %433 = math.tanh %432 : vector<8x32xf32>
    %434 = arith.mulf %429, %433 : vector<8x32xf32>
    %435 = arith.index_cast %413 : i32 to index
    %c0_154 = arith.constant 0 : index
    %436 = vector.load %arg18[%435, %c0_154] : memref<64x32xf32, #tpu.memory_space<vmem>>, vector<8x32xf32>
    tpu.vector_store %arg18[%435, %c0_154], %434 {strides = array<i32>} : memref<64x32xf32, #tpu.memory_space<vmem>>, vector<8x32xf32>,
    %c8_i32_155 = arith.constant 8 : i32
    %c1_156 = arith.constant 1 : index
    %c0_157 = arith.constant 0 : index
    %c0_158 = arith.constant 0 : index
    %437 = vector.load %arg15[%c1_156, %c0_157, %c0_158] : memref<2x8x32xf32, #tpu.memory_space<vmem>>, vector<1x8x32xf32>
    %438 = vector.shape_cast %437 : vector<1x8x32xf32> to vector<8x32xf32>
    %439 = vector.shape_cast %434 : vector<8x32xf32> to vector<1x8x32xf32>
    tpu.vector_store %arg15[%c1_156, %c0_157, %c0_158], %439 {strides = array<i32>} : memref<2x8x32xf32, #tpu.memory_space<vmem>>, vector<1x8x32xf32>,
    %c1_159 = arith.constant 1 : index
    %c0_160 = arith.constant 0 : index
    %c0_161 = arith.constant 0 : index
    %440 = vector.load %arg16[%c1_159, %c0_160, %c0_161] : memref<2x8x32xf32, #tpu.memory_space<vmem>>, vector<1x8x32xf32>
    %441 = vector.shape_cast %440 : vector<1x8x32xf32> to vector<8x32xf32>
    %442 = vector.shape_cast %432 : vector<8x32xf32> to vector<1x8x32xf32>
    tpu.vector_store %arg16[%c1_159, %c0_160, %c0_161], %442 {strides = array<i32>} : memref<2x8x32xf32, #tpu.memory_space<vmem>>, vector<1x8x32xf32>,
    %c0_162 = arith.constant 0 : index
    %c0_163 = arith.constant 0 : index
    %443 = vector.load %arg18[%c0_162, %c0_163] : memref<64x32xf32, #tpu.memory_space<vmem>>, vector<64x32xf32>
    %c0_164 = arith.constant 0 : index
    %c0_165 = arith.constant 0 : index
    %444 = vector.load %arg10[%c0_164, %c0_165] : memref<32x128xf32, #tpu.memory_space<vmem>>, vector<32x128xf32>
    %cst_166 = arith.constant dense<0.000000e+00> : vector<64x128xf32>
    %445 = tpu.matmul %443, %444, %cst_166 {dimension_numbers = #tpu.dot_dimension_numbers<[1], [0], [0], [1], [0, 0, 1, 1], [], []>} : vector<64x32xf32>, vector<32x128xf32>, vector<64x128xf32> -> vector<64x128xf32>
    %c0_167 = arith.constant 0 : index
    %c0_168 = arith.constant 0 : index
    %446 = vector.load %arg11[%c0_167, %c0_168] : memref<1x128xf32, #tpu.memory_space<vmem>>, vector<1x128xf32>
    %447 = vector.broadcast %446 : vector<1x128xf32> to vector<64x128xf32>
    %448 = arith.addf %445, %447 : vector<64x128xf32>
    %c0_169 = arith.constant 0 : index
    %c0_170 = arith.constant 0 : index
    %449 = vector.load %arg12[%c0_169, %c0_170] : memref<64x128xf32, #tpu.memory_space<vmem>>, vector<64x128xf32>
    tpu.vector_store %arg12[%c0_169, %c0_170], %448 {strides = array<i32>} : memref<64x128xf32, #tpu.memory_space<vmem>>, vector<64x128xf32>,
    %c0_171 = arith.constant 0 : index
    %c0_172 = arith.constant 0 : index
    %c0_173 = arith.constant 0 : index
    %450 = vector.load %arg15[%c0_171, %c0_172, %c0_173] : memref<2x8x32xf32, #tpu.memory_space<vmem>>, vector<2x8x32xf32>
    %c0_174 = arith.constant 0 : index
    %c0_175 = arith.constant 0 : index
    %c0_176 = arith.constant 0 : index
    %451 = vector.load %arg13[%c0_174, %c0_175, %c0_176] : memref<2x8x32xf32, #tpu.memory_space<vmem>>, vector<2x8x32xf32>
    tpu.vector_store %arg13[%c0_174, %c0_175, %c0_176], %450 {strides = array<i32>} : memref<2x8x32xf32, #tpu.memory_space<vmem>>, vector<2x8x32xf32>,
    %c0_177 = arith.constant 0 : index
    %c0_178 = arith.constant 0 : index
    %c0_179 = arith.constant 0 : index
    %452 = vector.load %arg16[%c0_177, %c0_178, %c0_179] : memref<2x8x32xf32, #tpu.memory_space<vmem>>, vector<2x8x32xf32>
    %c0_180 = arith.constant 0 : index
    %c0_181 = arith.constant 0 : index
    %c0_182 = arith.constant 0 : index
    %453 = vector.load %arg14[%c0_180, %c0_181, %c0_182] : memref<2x8x32xf32, #tpu.memory_space<vmem>>, vector<2x8x32xf32>
    tpu.vector_store %arg14[%c0_180, %c0_181, %c0_182], %452 {strides = array<i32>} : memref<2x8x32xf32, #tpu.memory_space<vmem>>, vector<2x8x32xf32>,
    return
  }
  func.func @transform_0(%arg0: i32) -> (i32, i32) {
    %c0_i32 = arith.constant 0 : i32
    %c0_i32_0 = arith.constant 0 : i32
    return %arg0, %c0_i32 : i32, i32
  }
  func.func @transform_1(%arg0: i32) -> (i32, i32, i32) {
    %c0_i32 = arith.constant 0 : i32
    %c0_i32_0 = arith.constant 0 : i32
    %c0_i32_1 = arith.constant 0 : i32
    %c0_i32_2 = arith.constant 0 : i32
    return %c0_i32, %c0_i32_0, %c0_i32_1 : i32, i32, i32
  }
  func.func @transform_2(%arg0: i32) -> (i32, i32, i32) {
    %c0_i32 = arith.constant 0 : i32
    %c0_i32_0 = arith.constant 0 : i32
    %c0_i32_1 = arith.constant 0 : i32
    %c0_i32_2 = arith.constant 0 : i32
    return %c0_i32, %c0_i32_0, %c0_i32_1 : i32, i32, i32
  }
  func.func @transform_3(%arg0: i32) -> (i32, i32) {
    %c0_i32 = arith.constant 0 : i32
    %c0_i32_0 = arith.constant 0 : i32
    %c0_i32_1 = arith.constant 0 : i32
    return %c0_i32, %c0_i32_0 : i32, i32
  }
  func.func @transform_4(%arg0: i32) -> (i32, i32) {
    %c0_i32 = arith.constant 0 : i32
    %c0_i32_0 = arith.constant 0 : i32
    %c0_i32_1 = arith.constant 0 : i32
    return %c0_i32, %c0_i32_0 : i32, i32
  }
  func.func @transform_5(%arg0: i32) -> (i32, i32) {
    %c0_i32 = arith.constant 0 : i32
    %c0_i32_0 = arith.constant 0 : i32
    %c0_i32_1 = arith.constant 0 : i32
    return %c0_i32, %c0_i32_0 : i32, i32
  }
  func.func @transform_6(%arg0: i32) -> (i32, i32) {
    %c0_i32 = arith.constant 0 : i32
    %c0_i32_0 = arith.constant 0 : i32
    %c0_i32_1 = arith.constant 0 : i32
    return %c0_i32, %c0_i32_0 : i32, i32
  }
  func.func @transform_7(%arg0: i32) -> (i32, i32) {
    %c0_i32 = arith.constant 0 : i32
    %c0_i32_0 = arith.constant 0 : i32
    %c0_i32_1 = arith.constant 0 : i32
    return %c0_i32, %c0_i32_0 : i32, i32
  }
  func.func @transform_8(%arg0: i32) -> (i32, i32) {
    %c0_i32 = arith.constant 0 : i32
    %c0_i32_0 = arith.constant 0 : i32
    %c0_i32_1 = arith.constant 0 : i32
    return %c0_i32, %c0_i32_0 : i32, i32
  }
  func.func @transform_9(%arg0: i32) -> (i32, i32) {
    %c0_i32 = arith.constant 0 : i32
    %c0_i32_0 = arith.constant 0 : i32
    %c0_i32_1 = arith.constant 0 : i32
    return %c0_i32, %c0_i32_0 : i32, i32
  }
  func.func @transform_10(%arg0: i32) -> (i32, i32) {
    %c0_i32 = arith.constant 0 : i32
    %c0_i32_0 = arith.constant 0 : i32
    %c0_i32_1 = arith.constant 0 : i32
    return %c0_i32, %c0_i32_0 : i32, i32
  }
  func.func @transform_11(%arg0: i32) -> (i32, i32) {
    %c0_i32 = arith.constant 0 : i32
    %c0_i32_0 = arith.constant 0 : i32
    return %arg0, %c0_i32 : i32, i32
  }
  func.func @transform_12(%arg0: i32) -> (i32, i32, i32) {
    %c0_i32 = arith.constant 0 : i32
    %c0_i32_0 = arith.constant 0 : i32
    %c0_i32_1 = arith.constant 0 : i32
    %c0_i32_2 = arith.constant 0 : i32
    return %c0_i32, %c0_i32_0, %c0_i32_1 : i32, i32, i32
  }
  func.func @transform_13(%arg0: i32) -> (i32, i32, i32) {
    %c0_i32 = arith.constant 0 : i32
    %c0_i32_0 = arith.constant 0 : i32
    %c0_i32_1 = arith.constant 0 : i32
    %c0_i32_2 = arith.constant 0 : i32
    return %c0_i32, %c0_i32_0, %c0_i32_1 : i32, i32, i32
  }
}

</mosaic_0001>

<llo_original>
// kernel: rnn_model_forward.1
$region0: #{rnn_model_forward.1}
  #allocation0 [shape = 'u32[]', space=smem, size = 0x4, offset = 0x4, fixed_abs, tag = 'smem constant byte address 0x4 - core index']
  #allocation1 [shape = 'u32[72,128]{1,0:T(1,128)}', space=vmem, size = 0x9000, scoped, tag = 'internal scratch']
  #allocation2 [shape = 'f32[2,8,32]{2,1,0:T(8,128)}', space=vmem, size = 0x2000, scoped, tag = 'scratch operand']
  #allocation3 [shape = 'f32[2,8,32]{2,1,0:T(8,128)}', space=vmem, size = 0x2000, scoped, tag = 'scratch operand']
  #allocation4 [shape = 'f32[64,128]{1,0:T(8,128)}', space=vmem, size = 0x8000, scoped, tag = 'scratch operand']
  #allocation5 [shape = 'f32[64,32]{1,0:T(8,128)}', space=vmem, size = 0x8000, scoped, tag = 'scratch operand']
  %s0 = inlined_call_operand.vmem [shape: f32[64,16], index: 0, kind: input, shape index: {}]
  %s1 = inlined_call_operand.vmem [shape: f32[2,8,32], index: 1, kind: input, shape index: {}]
  %s2 = inlined_call_operand.vmem [shape: f32[2,8,32], index: 2, kind: input, shape index: {}]
  %s3 = inlined_call_operand.hbm [shape: f32[16,128], index: 3, kind: input, shape index: {}]
  %s4 = inlined_call_operand.vmem [shape: f32[32,128], index: 4, kind: input, shape index: {}]
  %s5 = inlined_call_operand.vmem [shape: f32[1,128], index: 5, kind: input, shape index: {}]
  %s6 = inlined_call_operand.vmem [shape: f32[32,128], index: 6, kind: input, shape index: {}]
  %s7 = inlined_call_operand.vmem [shape: f32[32,128], index: 7, kind: input, shape index: {}]
  %s8 = inlined_call_operand.vmem [shape: f32[1,128], index: 8, kind: input, shape index: {}]
  %s9 = inlined_call_operand.hbm [shape: f32[32,128], index: 9, kind: input, shape index: {}]
  %s10 = inlined_call_operand.vmem [shape: f32[1,128], index: 10, kind: input, shape index: {}]
  %s11 = inlined_call_operand.vmem [shape: f32[64,128], index: 11, kind: output, shape index: {0}]
  %s12 = inlined_call_operand.vmem [shape: f32[2,8,32], index: 12, kind: output, shape index: {1}]
  %s13 = inlined_call_operand.vmem [shape: f32[2,8,32], index: 13, kind: output, shape index: {2}]
  %14 = xla_tuple %s11, %s12, %s13
  %s15 = sld [smem:[#allocation0]]
  $region82: #{rnn_model_forward.1} parent=0
    _
  %s17 = ssub.s32 1, %s15
  %s18 = scalar_select 0, %s17, %s15
  $region1: #{rnn_model_forward.1} parent=0
    #allocation6 [shape = 'u8[8192]{0}', space=vmem, size = 0x2000, scoped, tag = 'input window, operand 3, single buffered']
    #allocation7 [shape = 's32[1]{0}', space=sflag, size = 0x4, scoped, tag = 'scoped memory for rnn_model_forward.1']
    #allocation8 [shape = 'u8[16384]{0}', space=vmem, size = 0x4000, scoped, tag = 'input window, operand 9, single buffered']
    #allocation9 [shape = 's32[1]{0}', space=sflag, size = 0x4, scoped, tag = 'scoped memory for rnn_model_forward.1']
    %19 = vsyncpa [#allocation7], 0
    %20 = vsyncpa [#allocation9], 0
    // Predicated region
    $region2: #{rnn_model_forward.1} parent=1 // pred_check
      _
    $region3: #{rnn_model_forward.1} parent=1 // pred_check_branch
      %22 = sbr.rel (0) target = $region5
    $region4: #{rnn_model_forward.1} parent=1 // pred_region
      _
    $region5: #{rnn_model_forward.1} parent=1 // pred_fallthru
      _
    // Predicated region
    $region6: #{rnn_model_forward.1} parent=1 // pred_check
      _
    $region7: #{rnn_model_forward.1} parent=1 // pred_check_branch
      %24 = sbr.rel (0) target = $region9
    $region8: #{rnn_model_forward.1} parent=1 // pred_region
      _
    $region9: #{rnn_model_forward.1} parent=1 // pred_fallthru
      _
    // Predicated region
    $region10: #{rnn_model_forward.1} parent=1 // pred_check
      _
    $region11: #{rnn_model_forward.1} parent=1 // pred_check_branch
      %26 = sbr.rel (0) target = $region13
    $region12: #{rnn_model_forward.1} parent=1 // pred_region
      _
    $region13: #{rnn_model_forward.1} parent=1 // pred_fallthru
      _
    // Predicated region
    $region14: #{rnn_model_forward.1} parent=1 // pred_check
      _
    $region15: #{rnn_model_forward.1} parent=1 // pred_check_branch
      %28 = sbr.rel (0) target = $region17
    $region16: #{rnn_model_forward.1} parent=1 // pred_region
      %30 = vsyncadd [#allocation7], 0
      %s31 = sshll.u32 %s3, 4
      %s32 = int_to_ptr.hbm [resolvable:$true] %s31
      %s33 = sshll.u32 [#allocation6], 4
      %s34 = int_to_ptr.vmem [resolvable:$true] %s33
      %39 = dma.hbm_to_vmem [thread:$0]  %s32, 256, %s34, [#allocation7], 128, 128, 8
    $region17: #{rnn_model_forward.1} parent=1 // pred_fallthru
      _
    // Predicated region
    $region18: #{rnn_model_forward.1} parent=1 // pred_check
      _
    $region19: #{rnn_model_forward.1} parent=1 // pred_check_branch
      %41 = sbr.rel (0) target = $region21
    $region20: #{rnn_model_forward.1} parent=1 // pred_region
      _
    $region21: #{rnn_model_forward.1} parent=1 // pred_fallthru
      _
    // Predicated region
    $region22: #{rnn_model_forward.1} parent=1 // pred_check
      _
    $region23: #{rnn_model_forward.1} parent=1 // pred_check_branch
      %43 = sbr.rel (0) target = $region25
    $region24: #{rnn_model_forward.1} parent=1 // pred_region
      _
    $region25: #{rnn_model_forward.1} parent=1 // pred_fallthru
      _
    // Predicated region
    $region26: #{rnn_model_forward.1} parent=1 // pred_check
      _
    $region27: #{rnn_model_forward.1} parent=1 // pred_check_branch
      %45 = sbr.rel (0) target = $region29
    $region28: #{rnn_model_forward.1} parent=1 // pred_region
      _
    $region29: #{rnn_model_forward.1} parent=1 // pred_fallthru
      _
    // Predicated region
    $region30: #{rnn_model_forward.1} parent=1 // pred_check
      _
    $region31: #{rnn_model_forward.1} parent=1 // pred_check_branch
      %47 = sbr.rel (0) target = $region33
    $region32: #{rnn_model_forward.1} parent=1 // pred_region
      _
    $region33: #{rnn_model_forward.1} parent=1 // pred_fallthru
      _
    // Predicated region
    $region34: #{rnn_model_forward.1} parent=1 // pred_check
      _
    $region35: #{rnn_model_forward.1} parent=1 // pred_check_branch
      %49 = sbr.rel (0) target = $region37
    $region36: #{rnn_model_forward.1} parent=1 // pred_region
      _
    $region37: #{rnn_model_forward.1} parent=1 // pred_fallthru
      _
    // Predicated region
    $region38: #{rnn_model_forward.1} parent=1 // pred_check
      _
    $region39: #{rnn_model_forward.1} parent=1 // pred_check_branch
      %51 = sbr.rel (0) target = $region41
    $region40: #{rnn_model_forward.1} parent=1 // pred_region
      %53 = vsyncadd [#allocation9], 0
      %s54 = sshll.u32 %s9, 4
      %s55 = int_to_ptr.hbm [resolvable:$true] %s54
      %s56 = sshll.u32 [#allocation8], 4
      %s57 = int_to_ptr.vmem [resolvable:$true] %s56
      %62 = dma.hbm_to_vmem [thread:$0]  %s55, 512, %s57, [#allocation9], 128, 128, 8
    $region41: #{rnn_model_forward.1} parent=1 // pred_fallthru
      _
    // Predicated region
    $region42: #{rnn_model_forward.1} parent=1 // pred_check
      _
    $region43: #{rnn_model_forward.1} parent=1 // pred_check_branch
      %64 = sbr.rel (0) target = $region45
    $region44: #{rnn_model_forward.1} parent=1 // pred_region
      _
    $region45: #{rnn_model_forward.1} parent=1 // pred_fallthru
      _
    // Predicated region
    $region46: #{rnn_model_forward.1} parent=1 // pred_check
      _
    $region47: #{rnn_model_forward.1} parent=1 // pred_check_branch
      %66 = sbr.rel (0) target = $region49
    $region48: #{rnn_model_forward.1} parent=1 // pred_region
      %68 = dma.done [#allocation7], 256
    $region49: #{rnn_model_forward.1} parent=1 // pred_fallthru
      _
    // Predicated region
    $region50: #{rnn_model_forward.1} parent=1 // pred_check
      _
    $region51: #{rnn_model_forward.1} parent=1 // pred_check_branch
      %70 = sbr.rel (0) target = $region53
    $region52: #{rnn_model_forward.1} parent=1 // pred_region
      %72 = dma.done [#allocation9], 512
    $region53: #{rnn_model_forward.1} parent=1 // pred_fallthru
      _
    %p73 = scmp.eq.s32.totalorder 0, 0
    // Predicated region
    $region54: #{rnn_model_forward.1} parent=1 // pred_check
      %p74 = pneg %p73
    $region55: #{rnn_model_forward.1} parent=1 // pred_check_branch
      %76 = sbr.rel (%p74) target = $region57
    $region56: #{rnn_model_forward.1} parent=1 // pred_region
      %v77 = vld [vmem:[%s1] sm:$0xff]
      %v78 = vld [vmem:[%s1 + $0x8] sm:$0xff]
      %vm79 = vcmask 261120
      %80 = vst.msk [vmem:[#allocation2] sm:$0xff] %vm79, %v77
      %81 = vst.msk [vmem:[#allocation2 + $0x8] sm:$0xff] %vm79, %v78
      %v82 = vld [vmem:[%s2] sm:$0xff]
      %v83 = vld [vmem:[%s2 + $0x8] sm:$0xff]
      %84 = vst.msk [vmem:[#allocation3] sm:$0xff] %vm79, %v82
      %85 = vst.msk [vmem:[#allocation3 + $0x8] sm:$0xff] %vm79, %v83
    $region57: #{rnn_model_forward.1} parent=1 // pred_fallthru
      _
    %v86 = vlaneseq
    %v87 = vand.u32 %v86, 127
    %vm88 = vcmp.ge.s32.totalorder %v87, 64
    %vm89 = vcmp.lt.s32.totalorder %v87, 96
    %vm90 = vmand %vm88, %vm89
    %v91 = vld [vmem:[%s0] sm:$0xff]
    %v92 = vld [vmem:[%s0 + $0x8] sm:$0xff]
    %v93 = vld [vmem:[%s0 + $0x10] sm:$0xff]
    %v94 = vld [vmem:[%s0 + $0x18] sm:$0xff]
    %v95 = vld [vmem:[%s0 + $0x20] sm:$0xff]
    %v96 = vld [vmem:[%s0 + $0x28] sm:$0xff]
    %v97 = vld [vmem:[%s0 + $0x30] sm:$0xff]
    %v98 = vld [vmem:[%s0 + $0x38] sm:$0xff]
    %v99 = vld [vmem:[#allocation6] sm:$0xff]
    %v100 = vld [vmem:[#allocation6 + $0x8] sm:$0xff]
    %v101 = vld [vmem:[%s5] sm:$0x1]
    %v103 = vperm.slane %v101, 0
    %vm105 = vcmask 130048
    %v107 = vsel %vm105, %v91, 0
    %v110 = vsel %vm105, %v92, 0
    %v113 = vsel %vm105, %v93, 0
    %v116 = vsel %vm105, %v94, 0
    %v119 = vsel %vm105, %v95, 0
    %v122 = vsel %vm105, %v96, 0
    %v125 = vsel %vm105, %v97, 0
    %v128 = vsel %vm105, %v98, 0
    %130 = vmatpush.msra.mxu0 0.0
    %131 = vmatpush.msra.mxu0 0.0
    %132 = vmatpush.msra.mxu0 0.0
    %133 = vmatpush.msra.mxu0 0.0
    %134 = vmatpush.msra.mxu0 0.0
    %135 = vmatpush.msra.mxu0 0.0
    %136 = vmatpush.msra.mxu0 0.0
    %137 = vmatpush.msra.mxu0 0.0
    %138 = vmatpush.msra.mxu0 0.0
    %139 = vmatpush.msra.mxu0 0.0
    %140 = vmatpush.msra.mxu0 0.0
    %141 = vmatpush.msra.mxu0 0.0
    %142 = vmatpush.msra.mxu0 0.0
    %143 = vmatpush.msra.mxu0 0.0
    %144 = vmatpush.msra.mxu0 %v100
    %145 = vmatpush.msra.mxu0 %v99
    %146 = vmatmul.f32.gmra.mxu0 %v107
    %v147 = vpop.f32.mrf.mxu0
    %v148 = vadd.f32 %v103, %v147
    %149 = vmatmul.f32.gmra.mxu0 %v110
    %v150 = vpop.f32.mrf.mxu0
    %v151 = vadd.f32 %v103, %v150
    %152 = vmatmul.f32.gmra.mxu0 %v113
    %v153 = vpop.f32.mrf.mxu0
    %v154 = vadd.f32 %v103, %v153
    %155 = vmatmul.f32.gmra.mxu0 %v116
    %v156 = vpop.f32.mrf.mxu0
    %v157 = vadd.f32 %v103, %v156
    %158 = vmatmul.f32.gmra.mxu0 %v119
    %v159 = vpop.f32.mrf.mxu0
    %v160 = vadd.f32 %v103, %v159
    %161 = vmatmul.f32.gmra.mxu0 %v122
    %v162 = vpop.f32.mrf.mxu0
    %v163 = vadd.f32 %v103, %v162
    %164 = vmatmul.f32.gmra.mxu0 %v125
    %v165 = vpop.f32.mrf.mxu0
    %v166 = vadd.f32 %v103, %v165
    %167 = vmatmul.f32.gmra.mxu0 %v128
    %v168 = vpop.f32.mrf.mxu0
    %v169 = vadd.f32 %v103, %v168
    %170 = vdwg.mxu0
    %171 = vst [vmem:[#allocation4] sm:$0xff] %v148
    %172 = vst [vmem:[#allocation4 + $0x8] sm:$0xff] %v151
    %173 = vst [vmem:[#allocation4 + $0x10] sm:$0xff] %v154
    %174 = vst [vmem:[#allocation4 + $0x18] sm:$0xff] %v157
    %175 = vst [vmem:[#allocation4 + $0x20] sm:$0xff] %v160
    %176 = vst [vmem:[#allocation4 + $0x28] sm:$0xff] %v163
    %177 = vst [vmem:[#allocation4 + $0x30] sm:$0xff] %v166
    %178 = vst [vmem:[#allocation4 + $0x38] sm:$0xff] %v169
    %v179 = vld [vmem:[#allocation2] sm:$0xff]
    %v180 = vld [vmem:[#allocation3] sm:$0xff]
    %v181 = vld [vmem:[#allocation4] sm:$0xff]
    %v182 = vld [vmem:[%s4] sm:$0xff]
    %v183 = vld [vmem:[%s4 + $0x8] sm:$0xff]
    %v184 = vld [vmem:[%s4 + $0x10] sm:$0xff]
    %v185 = vld [vmem:[%s4 + $0x18] sm:$0xff]
    %vm186 = vcmask 261120
    %v188 = vsel %vm186, %v179, 0
    %190 = vmatpush.msra.mxu0 0.0
    %191 = vmatpush.msra.mxu0 0.0
    %192 = vmatpush.msra.mxu0 0.0
    %193 = vmatpush.msra.mxu0 0.0
    %194 = vmatpush.msra.mxu0 0.0
    %195 = vmatpush.msra.mxu0 0.0
    %196 = vmatpush.msra.mxu0 0.0
    %197 = vmatpush.msra.mxu0 0.0
    %198 = vmatpush.msra.mxu0 0.0
    %199 = vmatpush.msra.mxu0 0.0
    %200 = vmatpush.msra.mxu0 0.0
    %201 = vmatpush.msra.mxu0 0.0
    %202 = vmatpush.msra.mxu0 %v185
    %203 = vmatpush.msra.mxu0 %v184
    %204 = vmatpush.msra.mxu0 %v183
    %205 = vmatpush.msra.mxu0 %v182
    %206 = vmatmul.f32.gmra.mxu0 %v188
    %v207 = vpop.f32.mrf.mxu0
    %v208 = vadd.f32 0.0, %v207
    %209 = vdwg.mxu0
    %v210 = vadd.f32 %v181, %v208
    %v211 = vtanh.pop %v210
    %v212 = vxor.u32 %v210, 2147483648
    %v213 = vmul.f32 %v212, 1.442695
    %v214 = vpow.pop %v213
    %v215 = vadd.f32 %v214, 1.0
    %v216 = vrcp.pop %v215
    %v217 = vmul.f32 %v215, %v216
    %v218 = vsub.f32 1.0, %v217
    %v219 = vmul.f32 %v216, %v218
    %v220 = vadd.f32 %v216, %v219
    %vm221 = vweird.f32 %v215
    %vm222 = vweird.f32 %v216
    %vm223 = vmor %vm221, %vm222
    %v224 = vsel %vm223, %v216, %v220
    %v225 = vand.u32 2147483647, %v215
    %vm226 = vcmp.eq.f32.partialorder %v225, 8.507059e+37
    %v227 = vand.u32 %v215, 2147483648
    %v228 = vor.u32 1.1754944e-38, %v227
    %v229 = vsel %vm226, %v228, %v224
    %v230 = vmul.f32 1.0, %v229
    %v231 = vsel %vm90, %v211, %v230
    %233 = vrot.lane.b32.xlu0 %v180, 32
    %v234 = vpop.permute.xlu0 %233
    %v236 = vmul.f32 %v231, %v234
    %238 = vrot.lane.b32.xlu0 %v231, 64
    %v239 = vpop.permute.xlu0 %238
    %v241 = vmul.f32 %v231, %v239
    %243 = vrot.lane.b32.xlu0 %v241, 32
    %v244 = vpop.permute.xlu0 %243
    %v246 = vadd.f32 %v236, %v244
    %v247 = vtanh.pop %v246
    %249 = vrot.lane.b32.xlu0 %v247, 64
    %v250 = vpop.permute.xlu0 %249
    %v252 = vmul.f32 %v231, %v250
    %254 = vrot.lane.b32.xlu0 %v252, 32
    %v255 = vpop.permute.xlu0 %254
    %257 = vst.msk [vmem:[#allocation5] sm:$0xff] %vm186, %v255
    %s258 = scalar_lea.vmem [#allocation4], 8
    %v259 = vld [vmem:[%s258] sm:$0xff]
    %v260 = vld [vmem:[%s4] sm:$0xff]
    %v261 = vld [vmem:[%s4 + $0x8] sm:$0xff]
    %v262 = vld [vmem:[%s4 + $0x10] sm:$0xff]
    %v263 = vld [vmem:[%s4 + $0x18] sm:$0xff]
    %v264 = vsel %vm186, %v255, 0
    %266 = vmatpush.msra.mxu0 0.0
    %267 = vmatpush.msra.mxu0 0.0
    %268 = vmatpush.msra.mxu0 0.0
    %269 = vmatpush.msra.mxu0 0.0
    %270 = vmatpush.msra.mxu0 0.0
    %271 = vmatpush.msra.mxu0 0.0
    %272 = vmatpush.msra.mxu0 0.0
    %273 = vmatpush.msra.mxu0 0.0
    %274 = vmatpush.msra.mxu0 0.0
    %275 = vmatpush.msra.mxu0 0.0
    %276 = vmatpush.msra.mxu0 0.0
    %277 = vmatpush.msra.mxu0 0.0
    %278 = vmatpush.msra.mxu0 %v263
    %279 = vmatpush.msra.mxu0 %v262
    %280 = vmatpush.msra.mxu0 %v261
    %281 = vmatpush.msra.mxu0 %v260
    %282 = vmatmul.f32.gmra.mxu0 %v264
    %v283 = vpop.f32.mrf.mxu0
    %v284 = vadd.f32 0.0, %v283
    %285 = vdwg.mxu0
    %v286 = vadd.f32 %v259, %v284
    %v287 = vtanh.pop %v286
    %v288 = vxor.u32 %v286, 2147483648
    %v289 = vmul.f32 %v288, 1.442695
    %v290 = vpow.pop %v289
    %v291 = vadd.f32 %v290, 1.0
    %v292 = vrcp.pop %v291
    %v293 = vmul.f32 %v291, %v292
    %v294 = vsub.f32 1.0, %v293
    %v295 = vmul.f32 %v292, %v294
    %v296 = vadd.f32 %v292, %v295
    %vm297 = vweird.f32 %v291
    %vm298 = vweird.f32 %v292
    %vm299 = vmor %vm297, %vm298
    %v300 = vsel %vm299, %v292, %v296
    %v301 = vand.u32 2147483647, %v291
    %vm302 = vcmp.eq.f32.partialorder %v301, 8.507059e+37
    %v303 = vand.u32 %v291, 2147483648
    %v304 = vor.u32 1.1754944e-38, %v303
    %v305 = vsel %vm302, %v304, %v300
    %v306 = vmul.f32 1.0, %v305
    %v307 = vsel %vm90, %v287, %v306
    %v308 = vmul.f32 %v307, %v246
    %310 = vrot.lane.b32.xlu0 %v307, 64
    %v311 = vpop.permute.xlu0 %310
    %v313 = vmul.f32 %v307, %v311
    %315 = vrot.lane.b32.xlu0 %v313, 32
    %v316 = vpop.permute.xlu0 %315
    %v318 = vadd.f32 %v308, %v316
    %v319 = vtanh.pop %v318
    %321 = vrot.lane.b32.xlu0 %v319, 64
    %v322 = vpop.permute.xlu0 %321
    %v324 = vmul.f32 %v307, %v322
    %326 = vrot.lane.b32.xlu0 %v324, 32
    %v327 = vpop.permute.xlu0 %326
    %s329 = scalar_lea.vmem [#allocation5], 8
    %330 = vst.msk [vmem:[%s329] sm:$0xff] %vm186, %v327
    %s331 = scalar_lea.vmem [#allocation4], 16
    %v332 = vld [vmem:[%s331] sm:$0xff]
    %v333 = vld [vmem:[%s4] sm:$0xff]
    %v334 = vld [vmem:[%s4 + $0x8] sm:$0xff]
    %v335 = vld [vmem:[%s4 + $0x10] sm:$0xff]
    %v336 = vld [vmem:[%s4 + $0x18] sm:$0xff]
    %v337 = vsel %vm186, %v327, 0
    %339 = vmatpush.msra.mxu0 0.0
    %340 = vmatpush.msra.mxu0 0.0
    %341 = vmatpush.msra.mxu0 0.0
    %342 = vmatpush.msra.mxu0 0.0
    %343 = vmatpush.msra.mxu0 0.0
    %344 = vmatpush.msra.mxu0 0.0
    %345 = vmatpush.msra.mxu0 0.0
    %346 = vmatpush.msra.mxu0 0.0
    %347 = vmatpush.msra.mxu0 0.0
    %348 = vmatpush.msra.mxu0 0.0
    %349 = vmatpush.msra.mxu0 0.0
    %350 = vmatpush.msra.mxu0 0.0
    %351 = vmatpush.msra.mxu0 %v336
    %352 = vmatpush.msra.mxu0 %v335
    %353 = vmatpush.msra.mxu0 %v334
    %354 = vmatpush.msra.mxu0 %v333
    %355 = vmatmul.f32.gmra.mxu0 %v337
    %v356 = vpop.f32.mrf.mxu0
    %v357 = vadd.f32 0.0, %v356
    %358 = vdwg.mxu0
    %v359 = vadd.f32 %v332, %v357
    %v360 = vtanh.pop %v359
    %v361 = vxor.u32 %v359, 2147483648
    %v362 = vmul.f32 %v361, 1.442695
    %v363 = vpow.pop %v362
    %v364 = vadd.f32 %v363, 1.0
    %v365 = vrcp.pop %v364
    %v366 = vmul.f32 %v364, %v365
    %v367 = vsub.f32 1.0, %v366
    %v368 = vmul.f32 %v365, %v367
    %v369 = vadd.f32 %v365, %v368
    %vm370 = vweird.f32 %v364
    %vm371 = vweird.f32 %v365
    %vm372 = vmor %vm370, %vm371
    %v373 = vsel %vm372, %v365, %v369
    %v374 = vand.u32 2147483647, %v364
    %vm375 = vcmp.eq.f32.partialorder %v374, 8.507059e+37
    %v376 = vand.u32 %v364, 2147483648
    %v377 = vor.u32 1.1754944e-38, %v376
    %v378 = vsel %vm375, %v377, %v373
    %v379 = vmul.f32 1.0, %v378
    %v380 = vsel %vm90, %v360, %v379
    %v381 = vmul.f32 %v380, %v318
    %383 = vrot.lane.b32.xlu0 %v380, 64
    %v384 = vpop.permute.xlu0 %383
    %v386 = vmul.f32 %v380, %v384
    %388 = vrot.lane.b32.xlu0 %v386, 32
    %v389 = vpop.permute.xlu0 %388
    %v391 = vadd.f32 %v381, %v389
    %v392 = vtanh.pop %v391
    %394 = vrot.lane.b32.xlu0 %v392, 64
    %v395 = vpop.permute.xlu0 %394
    %v397 = vmul.f32 %v380, %v395
    %399 = vrot.lane.b32.xlu0 %v397, 32
    %v400 = vpop.permute.xlu0 %399
    %s402 = scalar_lea.vmem [#allocation5], 16
    %403 = vst.msk [vmem:[%s402] sm:$0xff] %vm186, %v400
    %s404 = scalar_lea.vmem [#allocation4], 24
    %v405 = vld [vmem:[%s404] sm:$0xff]
    %v406 = vld [vmem:[%s4] sm:$0xff]
    %v407 = vld [vmem:[%s4 + $0x8] sm:$0xff]
    %v408 = vld [vmem:[%s4 + $0x10] sm:$0xff]
    %v409 = vld [vmem:[%s4 + $0x18] sm:$0xff]
    %v410 = vsel %vm186, %v400, 0
    %412 = vmatpush.msra.mxu0 0.0
    %413 = vmatpush.msra.mxu0 0.0
    %414 = vmatpush.msra.mxu0 0.0
    %415 = vmatpush.msra.mxu0 0.0
    %416 = vmatpush.msra.mxu0 0.0
    %417 = vmatpush.msra.mxu0 0.0
    %418 = vmatpush.msra.mxu0 0.0
    %419 = vmatpush.msra.mxu0 0.0
    %420 = vmatpush.msra.mxu0 0.0
    %421 = vmatpush.msra.mxu0 0.0
    %422 = vmatpush.msra.mxu0 0.0
    %423 = vmatpush.msra.mxu0 0.0
    %424 = vmatpush.msra.mxu0 %v409
    %425 = vmatpush.msra.mxu0 %v408
    %426 = vmatpush.msra.mxu0 %v407
    %427 = vmatpush.msra.mxu0 %v406
    %428 = vmatmul.f32.gmra.mxu0 %v410
    %v429 = vpop.f32.mrf.mxu0
    %v430 = vadd.f32 0.0, %v429
    %431 = vdwg.mxu0
    %v432 = vadd.f32 %v405, %v430
    %v433 = vtanh.pop %v432
    %v434 = vxor.u32 %v432, 2147483648
    %v435 = vmul.f32 %v434, 1.442695
    %v436 = vpow.pop %v435
    %v437 = vadd.f32 %v436, 1.0
    %v438 = vrcp.pop %v437
    %v439 = vmul.f32 %v437, %v438
    %v440 = vsub.f32 1.0, %v439
    %v441 = vmul.f32 %v438, %v440
    %v442 = vadd.f32 %v438, %v441
    %vm443 = vweird.f32 %v437
    %vm444 = vweird.f32 %v438
    %vm445 = vmor %vm443, %vm444
    %v446 = vsel %vm445, %v438, %v442
    %v447 = vand.u32 2147483647, %v437
    %vm448 = vcmp.eq.f32.partialorder %v447, 8.507059e+37
    %v449 = vand.u32 %v437, 2147483648
    %v450 = vor.u32 1.1754944e-38, %v449
    %v451 = vsel %vm448, %v450, %v446
    %v452 = vmul.f32 1.0, %v451
    %v453 = vsel %vm90, %v433, %v452
    %v454 = vmul.f32 %v453, %v391
    %456 = vrot.lane.b32.xlu0 %v453, 64
    %v457 = vpop.permute.xlu0 %456
    %v459 = vmul.f32 %v453, %v457
    %461 = vrot.lane.b32.xlu0 %v459, 32
    %v462 = vpop.permute.xlu0 %461
    %v464 = vadd.f32 %v454, %v462
    %v465 = vtanh.pop %v464
    %467 = vrot.lane.b32.xlu0 %v465, 64
    %v468 = vpop.permute.xlu0 %467
    %v470 = vmul.f32 %v453, %v468
    %472 = vrot.lane.b32.xlu0 %v470, 32
    %v473 = vpop.permute.xlu0 %472
    %s475 = scalar_lea.vmem [#allocation5], 24
    %476 = vst.msk [vmem:[%s475] sm:$0xff] %vm186, %v473
    %s477 = scalar_lea.vmem [#allocation4], 32
    %v478 = vld [vmem:[%s477] sm:$0xff]
    %v479 = vld [vmem:[%s4] sm:$0xff]
    %v480 = vld [vmem:[%s4 + $0x8] sm:$0xff]
    %v481 = vld [vmem:[%s4 + $0x10] sm:$0xff]
    %v482 = vld [vmem:[%s4 + $0x18] sm:$0xff]
    %v483 = vsel %vm186, %v473, 0
    %485 = vmatpush.msra.mxu0 0.0
    %486 = vmatpush.msra.mxu0 0.0
    %487 = vmatpush.msra.mxu0 0.0
    %488 = vmatpush.msra.mxu0 0.0
    %489 = vmatpush.msra.mxu0 0.0
    %490 = vmatpush.msra.mxu0 0.0
    %491 = vmatpush.msra.mxu0 0.0
    %492 = vmatpush.msra.mxu0 0.0
    %493 = vmatpush.msra.mxu0 0.0
    %494 = vmatpush.msra.mxu0 0.0
    %495 = vmatpush.msra.mxu0 0.0
    %496 = vmatpush.msra.mxu0 0.0
    %497 = vmatpush.msra.mxu0 %v482
    %498 = vmatpush.msra.mxu0 %v481
    %499 = vmatpush.msra.mxu0 %v480
    %500 = vmatpush.msra.mxu0 %v479
    %501 = vmatmul.f32.gmra.mxu0 %v483
    %v502 = vpop.f32.mrf.mxu0
    %v503 = vadd.f32 0.0, %v502
    %504 = vdwg.mxu0
    %v505 = vadd.f32 %v478, %v503
    %v506 = vtanh.pop %v505
    %v507 = vxor.u32 %v505, 2147483648
    %v508 = vmul.f32 %v507, 1.442695
    %v509 = vpow.pop %v508
    %v510 = vadd.f32 %v509, 1.0
    %v511 = vrcp.pop %v510
    %v512 = vmul.f32 %v510, %v511
    %v513 = vsub.f32 1.0, %v512
    %v514 = vmul.f32 %v511, %v513
    %v515 = vadd.f32 %v511, %v514
    %vm516 = vweird.f32 %v510
    %vm517 = vweird.f32 %v511
    %vm518 = vmor %vm516, %vm517
    %v519 = vsel %vm518, %v511, %v515
    %v520 = vand.u32 2147483647, %v510
    %vm521 = vcmp.eq.f32.partialorder %v520, 8.507059e+37
    %v522 = vand.u32 %v510, 2147483648
    %v523 = vor.u32 1.1754944e-38, %v522
    %v524 = vsel %vm521, %v523, %v519
    %v525 = vmul.f32 1.0, %v524
    %v526 = vsel %vm90, %v506, %v525
    %v527 = vmul.f32 %v526, %v464
    %529 = vrot.lane.b32.xlu0 %v526, 64
    %v530 = vpop.permute.xlu0 %529
    %v532 = vmul.f32 %v526, %v530
    %534 = vrot.lane.b32.xlu0 %v532, 32
    %v535 = vpop.permute.xlu0 %534
    %v537 = vadd.f32 %v527, %v535
    %v538 = vtanh.pop %v537
    %540 = vrot.lane.b32.xlu0 %v538, 64
    %v541 = vpop.permute.xlu0 %540
    %v543 = vmul.f32 %v526, %v541
    %545 = vrot.lane.b32.xlu0 %v543, 32
    %v546 = vpop.permute.xlu0 %545
    %s548 = scalar_lea.vmem [#allocation5], 32
    %549 = vst.msk [vmem:[%s548] sm:$0xff] %vm186, %v546
    %s550 = scalar_lea.vmem [#allocation4], 40
    %v551 = vld [vmem:[%s550] sm:$0xff]
    %v552 = vld [vmem:[%s4] sm:$0xff]
    %v553 = vld [vmem:[%s4 + $0x8] sm:$0xff]
    %v554 = vld [vmem:[%s4 + $0x10] sm:$0xff]
    %v555 = vld [vmem:[%s4 + $0x18] sm:$0xff]
    %v556 = vsel %vm186, %v546, 0
    %558 = vmatpush.msra.mxu0 0.0
    %559 = vmatpush.msra.mxu0 0.0
    %560 = vmatpush.msra.mxu0 0.0
    %561 = vmatpush.msra.mxu0 0.0
    %562 = vmatpush.msra.mxu0 0.0
    %563 = vmatpush.msra.mxu0 0.0
    %564 = vmatpush.msra.mxu0 0.0
    %565 = vmatpush.msra.mxu0 0.0
    %566 = vmatpush.msra.mxu0 0.0
    %567 = vmatpush.msra.mxu0 0.0
    %568 = vmatpush.msra.mxu0 0.0
    %569 = vmatpush.msra.mxu0 0.0
    %570 = vmatpush.msra.mxu0 %v555
    %571 = vmatpush.msra.mxu0 %v554
    %572 = vmatpush.msra.mxu0 %v553
    %573 = vmatpush.msra.mxu0 %v552
    %574 = vmatmul.f32.gmra.mxu0 %v556
    %v575 = vpop.f32.mrf.mxu0
    %v576 = vadd.f32 0.0, %v575
    %577 = vdwg.mxu0
    %v578 = vadd.f32 %v551, %v576
    %v579 = vtanh.pop %v578
    %v580 = vxor.u32 %v578, 2147483648
    %v581 = vmul.f32 %v580, 1.442695
    %v582 = vpow.pop %v581
    %v583 = vadd.f32 %v582, 1.0
    %v584 = vrcp.pop %v583
    %v585 = vmul.f32 %v583, %v584
    %v586 = vsub.f32 1.0, %v585
    %v587 = vmul.f32 %v584, %v586
    %v588 = vadd.f32 %v584, %v587
    %vm589 = vweird.f32 %v583
    %vm590 = vweird.f32 %v584
    %vm591 = vmor %vm589, %vm590
    %v592 = vsel %vm591, %v584, %v588
    %v593 = vand.u32 2147483647, %v583
    %vm594 = vcmp.eq.f32.partialorder %v593, 8.507059e+37
    %v595 = vand.u32 %v583, 2147483648
    %v596 = vor.u32 1.1754944e-38, %v595
    %v597 = vsel %vm594, %v596, %v592
    %v598 = vmul.f32 1.0, %v597
    %v599 = vsel %vm90, %v579, %v598
    %v600 = vmul.f32 %v599, %v537
    %602 = vrot.lane.b32.xlu0 %v599, 64
    %v603 = vpop.permute.xlu0 %602
    %v605 = vmul.f32 %v599, %v603
    %607 = vrot.lane.b32.xlu0 %v605, 32
    %v608 = vpop.permute.xlu0 %607
    %v610 = vadd.f32 %v600, %v608
    %v611 = vtanh.pop %v610
    %613 = vrot.lane.b32.xlu0 %v611, 64
    %v614 = vpop.permute.xlu0 %613
    %v616 = vmul.f32 %v599, %v614
    %618 = vrot.lane.b32.xlu0 %v616, 32
    %v619 = vpop.permute.xlu0 %618
    %s621 = scalar_lea.vmem [#allocation5], 40
    %622 = vst.msk [vmem:[%s621] sm:$0xff] %vm186, %v619
    %s623 = scalar_lea.vmem [#allocation4], 48
    %v624 = vld [vmem:[%s623] sm:$0xff]
    %v625 = vld [vmem:[%s4] sm:$0xff]
    %v626 = vld [vmem:[%s4 + $0x8] sm:$0xff]
    %v627 = vld [vmem:[%s4 + $0x10] sm:$0xff]
    %v628 = vld [vmem:[%s4 + $0x18] sm:$0xff]
    %v629 = vsel %vm186, %v619, 0
    %631 = vmatpush.msra.mxu0 0.0
    %632 = vmatpush.msra.mxu0 0.0
    %633 = vmatpush.msra.mxu0 0.0
    %634 = vmatpush.msra.mxu0 0.0
    %635 = vmatpush.msra.mxu0 0.0
    %636 = vmatpush.msra.mxu0 0.0
    %637 = vmatpush.msra.mxu0 0.0
    %638 = vmatpush.msra.mxu0 0.0
    %639 = vmatpush.msra.mxu0 0.0
    %640 = vmatpush.msra.mxu0 0.0
    %641 = vmatpush.msra.mxu0 0.0
    %642 = vmatpush.msra.mxu0 0.0
    %643 = vmatpush.msra.mxu0 %v628
    %644 = vmatpush.msra.mxu0 %v627
    %645 = vmatpush.msra.mxu0 %v626
    %646 = vmatpush.msra.mxu0 %v625
    %647 = vmatmul.f32.gmra.mxu0 %v629
    %v648 = vpop.f32.mrf.mxu0
    %v649 = vadd.f32 0.0, %v648
    %650 = vdwg.mxu0
    %v651 = vadd.f32 %v624, %v649
    %v652 = vtanh.pop %v651
    %v653 = vxor.u32 %v651, 2147483648
    %v654 = vmul.f32 %v653, 1.442695
    %v655 = vpow.pop %v654
    %v656 = vadd.f32 %v655, 1.0
    %v657 = vrcp.pop %v656
    %v658 = vmul.f32 %v656, %v657
    %v659 = vsub.f32 1.0, %v658
    %v660 = vmul.f32 %v657, %v659
    %v661 = vadd.f32 %v657, %v660
    %vm662 = vweird.f32 %v656
    %vm663 = vweird.f32 %v657
    %vm664 = vmor %vm662, %vm663
    %v665 = vsel %vm664, %v657, %v661
    %v666 = vand.u32 2147483647, %v656
    %vm667 = vcmp.eq.f32.partialorder %v666, 8.507059e+37
    %v668 = vand.u32 %v656, 2147483648
    %v669 = vor.u32 1.1754944e-38, %v668
    %v670 = vsel %vm667, %v669, %v665
    %v671 = vmul.f32 1.0, %v670
    %v672 = vsel %vm90, %v652, %v671
    %v673 = vmul.f32 %v672, %v610
    %675 = vrot.lane.b32.xlu0 %v672, 64
    %v676 = vpop.permute.xlu0 %675
    %v678 = vmul.f32 %v672, %v676
    %680 = vrot.lane.b32.xlu0 %v678, 32
    %v681 = vpop.permute.xlu0 %680
    %v683 = vadd.f32 %v673, %v681
    %v684 = vtanh.pop %v683
    %686 = vrot.lane.b32.xlu0 %v684, 64
    %v687 = vpop.permute.xlu0 %686
    %v689 = vmul.f32 %v672, %v687
    %691 = vrot.lane.b32.xlu0 %v689, 32
    %v692 = vpop.permute.xlu0 %691
    %s694 = scalar_lea.vmem [#allocation5], 48
    %695 = vst.msk [vmem:[%s694] sm:$0xff] %vm186, %v692
    %s696 = scalar_lea.vmem [#allocation4], 56
    %v697 = vld [vmem:[%s696] sm:$0xff]
    %v698 = vld [vmem:[%s4] sm:$0xff]
    %v699 = vld [vmem:[%s4 + $0x8] sm:$0xff]
    %v700 = vld [vmem:[%s4 + $0x10] sm:$0xff]
    %v701 = vld [vmem:[%s4 + $0x18] sm:$0xff]
    %v702 = vsel %vm186, %v692, 0
    %704 = vmatpush.msra.mxu0 0.0
    %705 = vmatpush.msra.mxu0 0.0
    %706 = vmatpush.msra.mxu0 0.0
    %707 = vmatpush.msra.mxu0 0.0
    %708 = vmatpush.msra.mxu0 0.0
    %709 = vmatpush.msra.mxu0 0.0
    %710 = vmatpush.msra.mxu0 0.0
    %711 = vmatpush.msra.mxu0 0.0
    %712 = vmatpush.msra.mxu0 0.0
    %713 = vmatpush.msra.mxu0 0.0
    %714 = vmatpush.msra.mxu0 0.0
    %715 = vmatpush.msra.mxu0 0.0
    %716 = vmatpush.msra.mxu0 %v701
    %717 = vmatpush.msra.mxu0 %v700
    %718 = vmatpush.msra.mxu0 %v699
    %719 = vmatpush.msra.mxu0 %v698
    %720 = vmatmul.f32.gmra.mxu0 %v702
    %v721 = vpop.f32.mrf.mxu0
    %v722 = vadd.f32 0.0, %v721
    %723 = vdwg.mxu0
    %v724 = vadd.f32 %v697, %v722
    %v725 = vtanh.pop %v724
    %v726 = vxor.u32 %v724, 2147483648
    %v727 = vmul.f32 %v726, 1.442695
    %v728 = vpow.pop %v727
    %v729 = vadd.f32 %v728, 1.0
    %v730 = vrcp.pop %v729
    %v731 = vmul.f32 %v729, %v730
    %v732 = vsub.f32 1.0, %v731
    %v733 = vmul.f32 %v730, %v732
    %v734 = vadd.f32 %v730, %v733
    %vm735 = vweird.f32 %v729
    %vm736 = vweird.f32 %v730
    %vm737 = vmor %vm735, %vm736
    %v738 = vsel %vm737, %v730, %v734
    %v739 = vand.u32 2147483647, %v729
    %vm740 = vcmp.eq.f32.partialorder %v739, 8.507059e+37
    %v741 = vand.u32 %v729, 2147483648
    %v742 = vor.u32 1.1754944e-38, %v741
    %v743 = vsel %vm740, %v742, %v738
    %v744 = vmul.f32 1.0, %v743
    %v745 = vsel %vm90, %v725, %v744
    %v746 = vmul.f32 %v745, %v683
    %748 = vrot.lane.b32.xlu0 %v745, 64
    %v749 = vpop.permute.xlu0 %748
    %v751 = vmul.f32 %v745, %v749
    %753 = vrot.lane.b32.xlu0 %v751, 32
    %v754 = vpop.permute.xlu0 %753
    %v756 = vadd.f32 %v746, %v754
    %v757 = vtanh.pop %v756
    %759 = vrot.lane.b32.xlu0 %v757, 64
    %v760 = vpop.permute.xlu0 %759
    %v762 = vmul.f32 %v745, %v760
    %764 = vrot.lane.b32.xlu0 %v762, 32
    %v765 = vpop.permute.xlu0 %764
    %s767 = scalar_lea.vmem [#allocation5], 56
    %768 = vst.msk [vmem:[%s767] sm:$0xff] %vm186, %v765
    %769 = vst.msk [vmem:[#allocation2] sm:$0xff] %vm186, %v765
    %771 = vrot.lane.b32.xlu0 %v756, 96
    %v772 = vpop.permute.xlu0 %771
    %774 = vst.msk [vmem:[#allocation3] sm:$0xff] %vm186, %v772
    %v775 = vld [vmem:[#allocation5] sm:$0xff]
    %v776 = vld [vmem:[#allocation5 + $0x8] sm:$0xff]
    %v777 = vld [vmem:[#allocation5 + $0x10] sm:$0xff]
    %v778 = vld [vmem:[#allocation5 + $0x18] sm:$0xff]
    %v779 = vld [vmem:[#allocation5 + $0x20] sm:$0xff]
    %v780 = vld [vmem:[#allocation5 + $0x28] sm:$0xff]
    %v781 = vld [vmem:[#allocation5 + $0x30] sm:$0xff]
    %v782 = vld [vmem:[#allocation5 + $0x38] sm:$0xff]
    %v783 = vld [vmem:[%s6] sm:$0xff]
    %v784 = vld [vmem:[%s6 + $0x8] sm:$0xff]
    %v785 = vld [vmem:[%s6 + $0x10] sm:$0xff]
    %v786 = vld [vmem:[%s6 + $0x18] sm:$0xff]
    %v787 = vld [vmem:[%s8] sm:$0x1]
    %v789 = vperm.slane %v787, 0
    %v792 = vsel %vm186, %v775, 0
    %v795 = vsel %vm186, %v776, 0
    %v798 = vsel %vm186, %v777, 0
    %v801 = vsel %vm186, %v778, 0
    %v804 = vsel %vm186, %v779, 0
    %v807 = vsel %vm186, %v780, 0
    %v810 = vsel %vm186, %v781, 0
    %v813 = vsel %vm186, %v782, 0
    %815 = vmatpush.msra.mxu0 0.0
    %816 = vmatpush.msra.mxu0 0.0
    %817 = vmatpush.msra.mxu0 0.0
    %818 = vmatpush.msra.mxu0 0.0
    %819 = vmatpush.msra.mxu0 0.0
    %820 = vmatpush.msra.mxu0 0.0
    %821 = vmatpush.msra.mxu0 0.0
    %822 = vmatpush.msra.mxu0 0.0
    %823 = vmatpush.msra.mxu0 0.0
    %824 = vmatpush.msra.mxu0 0.0
    %825 = vmatpush.msra.mxu0 0.0
    %826 = vmatpush.msra.mxu0 0.0
    %827 = vmatpush.msra.mxu0 %v786
    %828 = vmatpush.msra.mxu0 %v785
    %829 = vmatpush.msra.mxu0 %v784
    %830 = vmatpush.msra.mxu0 %v783
    %831 = vmatmul.f32.gmra.mxu0 %v792
    %v832 = vpop.f32.mrf.mxu0
    %v833 = vadd.f32 %v789, %v832
    %834 = vmatmul.f32.gmra.mxu0 %v795
    %v835 = vpop.f32.mrf.mxu0
    %v836 = vadd.f32 %v789, %v835
    %837 = vmatmul.f32.gmra.mxu0 %v798
    %v838 = vpop.f32.mrf.mxu0
    %v839 = vadd.f32 %v789, %v838
    %840 = vmatmul.f32.gmra.mxu0 %v801
    %v841 = vpop.f32.mrf.mxu0
    %v842 = vadd.f32 %v789, %v841
    %843 = vmatmul.f32.gmra.mxu0 %v804
    %v844 = vpop.f32.mrf.mxu0
    %v845 = vadd.f32 %v789, %v844
    %846 = vmatmul.f32.gmra.mxu0 %v807
    %v847 = vpop.f32.mrf.mxu0
    %v848 = vadd.f32 %v789, %v847
    %849 = vmatmul.f32.gmra.mxu0 %v810
    %v850 = vpop.f32.mrf.mxu0
    %v851 = vadd.f32 %v789, %v850
    %852 = vmatmul.f32.gmra.mxu0 %v813
    %v853 = vpop.f32.mrf.mxu0
    %v854 = vadd.f32 %v789, %v853
    %855 = vdwg.mxu0
    %856 = vst [vmem:[#allocation4] sm:$0xff] %v833
    %857 = vst [vmem:[#allocation4 + $0x8] sm:$0xff] %v836
    %858 = vst [vmem:[#allocation4 + $0x10] sm:$0xff] %v839
    %859 = vst [vmem:[#allocation4 + $0x18] sm:$0xff] %v842
    %860 = vst [vmem:[#allocation4 + $0x20] sm:$0xff] %v845
    %861 = vst [vmem:[#allocation4 + $0x28] sm:$0xff] %v848
    %862 = vst [vmem:[#allocation4 + $0x30] sm:$0xff] %v851
    %863 = vst [vmem:[#allocation4 + $0x38] sm:$0xff] %v854
    %s864 = scalar_lea.vmem [#allocation2], 8
    %v865 = vld [vmem:[%s864] sm:$0xff]
    %s866 = scalar_lea.vmem [#allocation3], 8
    %v867 = vld [vmem:[%s866] sm:$0xff]
    %v868 = vld [vmem:[#allocation4] sm:$0xff]
    %v869 = vld [vmem:[%s7] sm:$0xff]
    %v870 = vld [vmem:[%s7 + $0x8] sm:$0xff]
    %v871 = vld [vmem:[%s7 + $0x10] sm:$0xff]
    %v872 = vld [vmem:[%s7 + $0x18] sm:$0xff]
    %v874 = vsel %vm186, %v865, 0
    %876 = vmatpush.msra.mxu0 0.0
    %877 = vmatpush.msra.mxu0 0.0
    %878 = vmatpush.msra.mxu0 0.0
    %879 = vmatpush.msra.mxu0 0.0
    %880 = vmatpush.msra.mxu0 0.0
    %881 = vmatpush.msra.mxu0 0.0
    %882 = vmatpush.msra.mxu0 0.0
    %883 = vmatpush.msra.mxu0 0.0
    %884 = vmatpush.msra.mxu0 0.0
    %885 = vmatpush.msra.mxu0 0.0
    %886 = vmatpush.msra.mxu0 0.0
    %887 = vmatpush.msra.mxu0 0.0
    %888 = vmatpush.msra.mxu0 %v872
    %889 = vmatpush.msra.mxu0 %v871
    %890 = vmatpush.msra.mxu0 %v870
    %891 = vmatpush.msra.mxu0 %v869
    %892 = vmatmul.f32.gmra.mxu0 %v874
    %v893 = vpop.f32.mrf.mxu0
    %v894 = vadd.f32 0.0, %v893
    %895 = vdwg.mxu0
    %v896 = vadd.f32 %v868, %v894
    %v897 = vtanh.pop %v896
    %v898 = vxor.u32 %v896, 2147483648
    %v899 = vmul.f32 %v898, 1.442695
    %v900 = vpow.pop %v899
    %v901 = vadd.f32 %v900, 1.0
    %v902 = vrcp.pop %v901
    %v903 = vmul.f32 %v901, %v902
    %v904 = vsub.f32 1.0, %v903
    %v905 = vmul.f32 %v902, %v904
    %v906 = vadd.f32 %v902, %v905
    %vm907 = vweird.f32 %v901
    %vm908 = vweird.f32 %v902
    %vm909 = vmor %vm907, %vm908
    %v910 = vsel %vm909, %v902, %v906
    %v911 = vand.u32 2147483647, %v901
    %vm912 = vcmp.eq.f32.partialorder %v911, 8.507059e+37
    %v913 = vand.u32 %v901, 2147483648
    %v914 = vor.u32 1.1754944e-38, %v913
    %v915 = vsel %vm912, %v914, %v910
    %v916 = vmul.f32 1.0, %v915
    %v917 = vsel %vm90, %v897, %v916
    %919 = vrot.lane.b32.xlu0 %v867, 32
    %v920 = vpop.permute.xlu0 %919
    %v922 = vmul.f32 %v917, %v920
    %924 = vrot.lane.b32.xlu0 %v917, 64
    %v925 = vpop.permute.xlu0 %924
    %v927 = vmul.f32 %v917, %v925
    %929 = vrot.lane.b32.xlu0 %v927, 32
    %v930 = vpop.permute.xlu0 %929
    %v932 = vadd.f32 %v922, %v930
    %v933 = vtanh.pop %v932
    %935 = vrot.lane.b32.xlu0 %v933, 64
    %v936 = vpop.permute.xlu0 %935
    %v938 = vmul.f32 %v917, %v936
    %940 = vrot.lane.b32.xlu0 %v938, 32
    %v941 = vpop.permute.xlu0 %940
    %943 = vst.msk [vmem:[#allocation5] sm:$0xff] %vm186, %v941
    %v944 = vld [vmem:[%s258] sm:$0xff]
    %v945 = vld [vmem:[%s7] sm:$0xff]
    %v946 = vld [vmem:[%s7 + $0x8] sm:$0xff]
    %v947 = vld [vmem:[%s7 + $0x10] sm:$0xff]
    %v948 = vld [vmem:[%s7 + $0x18] sm:$0xff]
    %v949 = vsel %vm186, %v941, 0
    %951 = vmatpush.msra.mxu0 0.0
    %952 = vmatpush.msra.mxu0 0.0
    %953 = vmatpush.msra.mxu0 0.0
    %954 = vmatpush.msra.mxu0 0.0
    %955 = vmatpush.msra.mxu0 0.0
    %956 = vmatpush.msra.mxu0 0.0
    %957 = vmatpush.msra.mxu0 0.0
    %958 = vmatpush.msra.mxu0 0.0
    %959 = vmatpush.msra.mxu0 0.0
    %960 = vmatpush.msra.mxu0 0.0
    %961 = vmatpush.msra.mxu0 0.0
    %962 = vmatpush.msra.mxu0 0.0
    %963 = vmatpush.msra.mxu0 %v948
    %964 = vmatpush.msra.mxu0 %v947
    %965 = vmatpush.msra.mxu0 %v946
    %966 = vmatpush.msra.mxu0 %v945
    %967 = vmatmul.f32.gmra.mxu0 %v949
    %v968 = vpop.f32.mrf.mxu0
    %v969 = vadd.f32 0.0, %v968
    %970 = vdwg.mxu0
    %v971 = vadd.f32 %v944, %v969
    %v972 = vtanh.pop %v971
    %v973 = vxor.u32 %v971, 2147483648
    %v974 = vmul.f32 %v973, 1.442695
    %v975 = vpow.pop %v974
    %v976 = vadd.f32 %v975, 1.0
    %v977 = vrcp.pop %v976
    %v978 = vmul.f32 %v976, %v977
    %v979 = vsub.f32 1.0, %v978
    %v980 = vmul.f32 %v977, %v979
    %v981 = vadd.f32 %v977, %v980
    %vm982 = vweird.f32 %v976
    %vm983 = vweird.f32 %v977
    %vm984 = vmor %vm982, %vm983
    %v985 = vsel %vm984, %v977, %v981
    %v986 = vand.u32 2147483647, %v976
    %vm987 = vcmp.eq.f32.partialorder %v986, 8.507059e+37
    %v988 = vand.u32 %v976, 2147483648
    %v989 = vor.u32 1.1754944e-38, %v988
    %v990 = vsel %vm987, %v989, %v985
    %v991 = vmul.f32 1.0, %v990
    %v992 = vsel %vm90, %v972, %v991
    %v993 = vmul.f32 %v992, %v932
    %995 = vrot.lane.b32.xlu0 %v992, 64
    %v996 = vpop.permute.xlu0 %995
    %v998 = vmul.f32 %v992, %v996
    %1000 = vrot.lane.b32.xlu0 %v998, 32
    %v1001 = vpop.permute.xlu0 %1000
    %v1003 = vadd.f32 %v993, %v1001
    %v1004 = vtanh.pop %v1003
    %1006 = vrot.lane.b32.xlu0 %v1004, 64
    %v1007 = vpop.permute.xlu0 %1006
    %v1009 = vmul.f32 %v992, %v1007
    %1011 = vrot.lane.b32.xlu0 %v1009, 32
    %v1012 = vpop.permute.xlu0 %1011
    %1014 = vst.msk [vmem:[%s329] sm:$0xff] %vm186, %v1012
    %v1015 = vld [vmem:[%s331] sm:$0xff]
    %v1016 = vld [vmem:[%s7] sm:$0xff]
    %v1017 = vld [vmem:[%s7 + $0x8] sm:$0xff]
    %v1018 = vld [vmem:[%s7 + $0x10] sm:$0xff]
    %v1019 = vld [vmem:[%s7 + $0x18] sm:$0xff]
    %v1020 = vsel %vm186, %v1012, 0
    %1022 = vmatpush.msra.mxu0 0.0
    %1023 = vmatpush.msra.mxu0 0.0
    %1024 = vmatpush.msra.mxu0 0.0
    %1025 = vmatpush.msra.mxu0 0.0
    %1026 = vmatpush.msra.mxu0 0.0
    %1027 = vmatpush.msra.mxu0 0.0
    %1028 = vmatpush.msra.mxu0 0.0
    %1029 = vmatpush.msra.mxu0 0.0
    %1030 = vmatpush.msra.mxu0 0.0
    %1031 = vmatpush.msra.mxu0 0.0
    %1032 = vmatpush.msra.mxu0 0.0
    %1033 = vmatpush.msra.mxu0 0.0
    %1034 = vmatpush.msra.mxu0 %v1019
    %1035 = vmatpush.msra.mxu0 %v1018
    %1036 = vmatpush.msra.mxu0 %v1017
    %1037 = vmatpush.msra.mxu0 %v1016
    %1038 = vmatmul.f32.gmra.mxu0 %v1020
    %v1039 = vpop.f32.mrf.mxu0
    %v1040 = vadd.f32 0.0, %v1039
    %1041 = vdwg.mxu0
    %v1042 = vadd.f32 %v1015, %v1040
    %v1043 = vtanh.pop %v1042
    %v1044 = vxor.u32 %v1042, 2147483648
    %v1045 = vmul.f32 %v1044, 1.442695
    %v1046 = vpow.pop %v1045
    %v1047 = vadd.f32 %v1046, 1.0
    %v1048 = vrcp.pop %v1047
    %v1049 = vmul.f32 %v1047, %v1048
    %v1050 = vsub.f32 1.0, %v1049
    %v1051 = vmul.f32 %v1048, %v1050
    %v1052 = vadd.f32 %v1048, %v1051
    %vm1053 = vweird.f32 %v1047
    %vm1054 = vweird.f32 %v1048
    %vm1055 = vmor %vm1053, %vm1054
    %v1056 = vsel %vm1055, %v1048, %v1052
    %v1057 = vand.u32 2147483647, %v1047
    %vm1058 = vcmp.eq.f32.partialorder %v1057, 8.507059e+37
    %v1059 = vand.u32 %v1047, 2147483648
    %v1060 = vor.u32 1.1754944e-38, %v1059
    %v1061 = vsel %vm1058, %v1060, %v1056
    %v1062 = vmul.f32 1.0, %v1061
    %v1063 = vsel %vm90, %v1043, %v1062
    %v1064 = vmul.f32 %v1063, %v1003
    %1066 = vrot.lane.b32.xlu0 %v1063, 64
    %v1067 = vpop.permute.xlu0 %1066
    %v1069 = vmul.f32 %v1063, %v1067
    %1071 = vrot.lane.b32.xlu0 %v1069, 32
    %v1072 = vpop.permute.xlu0 %1071
    %v1074 = vadd.f32 %v1064, %v1072
    %v1075 = vtanh.pop %v1074
    %1077 = vrot.lane.b32.xlu0 %v1075, 64
    %v1078 = vpop.permute.xlu0 %1077
    %v1080 = vmul.f32 %v1063, %v1078
    %1082 = vrot.lane.b32.xlu0 %v1080, 32
    %v1083 = vpop.permute.xlu0 %1082
    %1085 = vst.msk [vmem:[%s402] sm:$0xff] %vm186, %v1083
    %v1086 = vld [vmem:[%s404] sm:$0xff]
    %v1087 = vld [vmem:[%s7] sm:$0xff]
    %v1088 = vld [vmem:[%s7 + $0x8] sm:$0xff]
    %v1089 = vld [vmem:[%s7 + $0x10] sm:$0xff]
    %v1090 = vld [vmem:[%s7 + $0x18] sm:$0xff]
    %v1091 = vsel %vm186, %v1083, 0
    %1093 = vmatpush.msra.mxu0 0.0
    %1094 = vmatpush.msra.mxu0 0.0
    %1095 = vmatpush.msra.mxu0 0.0
    %1096 = vmatpush.msra.mxu0 0.0
    %1097 = vmatpush.msra.mxu0 0.0
    %1098 = vmatpush.msra.mxu0 0.0
    %1099 = vmatpush.msra.mxu0 0.0
    %1100 = vmatpush.msra.mxu0 0.0
    %1101 = vmatpush.msra.mxu0 0.0
    %1102 = vmatpush.msra.mxu0 0.0
    %1103 = vmatpush.msra.mxu0 0.0
    %1104 = vmatpush.msra.mxu0 0.0
    %1105 = vmatpush.msra.mxu0 %v1090
    %1106 = vmatpush.msra.mxu0 %v1089
    %1107 = vmatpush.msra.mxu0 %v1088
    %1108 = vmatpush.msra.mxu0 %v1087
    %1109 = vmatmul.f32.gmra.mxu0 %v1091
    %v1110 = vpop.f32.mrf.mxu0
    %v1111 = vadd.f32 0.0, %v1110
    %1112 = vdwg.mxu0
    %v1113 = vadd.f32 %v1086, %v1111
    %v1114 = vtanh.pop %v1113
    %v1115 = vxor.u32 %v1113, 2147483648
    %v1116 = vmul.f32 %v1115, 1.442695
    %v1117 = vpow.pop %v1116
    %v1118 = vadd.f32 %v1117, 1.0
    %v1119 = vrcp.pop %v1118
    %v1120 = vmul.f32 %v1118, %v1119
    %v1121 = vsub.f32 1.0, %v1120
    %v1122 = vmul.f32 %v1119, %v1121
    %v1123 = vadd.f32 %v1119, %v1122
    %vm1124 = vweird.f32 %v1118
    %vm1125 = vweird.f32 %v1119
    %vm1126 = vmor %vm1124, %vm1125
    %v1127 = vsel %vm1126, %v1119, %v1123
    %v1128 = vand.u32 2147483647, %v1118
    %vm1129 = vcmp.eq.f32.partialorder %v1128, 8.507059e+37
    %v1130 = vand.u32 %v1118, 2147483648
    %v1131 = vor.u32 1.1754944e-38, %v1130
    %v1132 = vsel %vm1129, %v1131, %v1127
    %v1133 = vmul.f32 1.0, %v1132
    %v1134 = vsel %vm90, %v1114, %v1133
    %v1135 = vmul.f32 %v1134, %v1074
    %1137 = vrot.lane.b32.xlu0 %v1134, 64
    %v1138 = vpop.permute.xlu0 %1137
    %v1140 = vmul.f32 %v1134, %v1138
    %1142 = vrot.lane.b32.xlu0 %v1140, 32
    %v1143 = vpop.permute.xlu0 %1142
    %v1145 = vadd.f32 %v1135, %v1143
    %v1146 = vtanh.pop %v1145
    %1148 = vrot.lane.b32.xlu0 %v1146, 64
    %v1149 = vpop.permute.xlu0 %1148
    %v1151 = vmul.f32 %v1134, %v1149
    %1153 = vrot.lane.b32.xlu0 %v1151, 32
    %v1154 = vpop.permute.xlu0 %1153
    %1156 = vst.msk [vmem:[%s475] sm:$0xff] %vm186, %v1154
    %v1157 = vld [vmem:[%s477] sm:$0xff]
    %v1158 = vld [vmem:[%s7] sm:$0xff]
    %v1159 = vld [vmem:[%s7 + $0x8] sm:$0xff]
    %v1160 = vld [vmem:[%s7 + $0x10] sm:$0xff]
    %v1161 = vld [vmem:[%s7 + $0x18] sm:$0xff]
    %v1162 = vsel %vm186, %v1154, 0
    %1164 = vmatpush.msra.mxu0 0.0
    %1165 = vmatpush.msra.mxu0 0.0
    %1166 = vmatpush.msra.mxu0 0.0
    %1167 = vmatpush.msra.mxu0 0.0
    %1168 = vmatpush.msra.mxu0 0.0
    %1169 = vmatpush.msra.mxu0 0.0
    %1170 = vmatpush.msra.mxu0 0.0
    %1171 = vmatpush.msra.mxu0 0.0
    %1172 = vmatpush.msra.mxu0 0.0
    %1173 = vmatpush.msra.mxu0 0.0
    %1174 = vmatpush.msra.mxu0 0.0
    %1175 = vmatpush.msra.mxu0 0.0
    %1176 = vmatpush.msra.mxu0 %v1161
    %1177 = vmatpush.msra.mxu0 %v1160
    %1178 = vmatpush.msra.mxu0 %v1159
    %1179 = vmatpush.msra.mxu0 %v1158
    %1180 = vmatmul.f32.gmra.mxu0 %v1162
    %v1181 = vpop.f32.mrf.mxu0
    %v1182 = vadd.f32 0.0, %v1181
    %1183 = vdwg.mxu0
    %v1184 = vadd.f32 %v1157, %v1182
    %v1185 = vtanh.pop %v1184
    %v1186 = vxor.u32 %v1184, 2147483648
    %v1187 = vmul.f32 %v1186, 1.442695
    %v1188 = vpow.pop %v1187
    %v1189 = vadd.f32 %v1188, 1.0
    %v1190 = vrcp.pop %v1189
    %v1191 = vmul.f32 %v1189, %v1190
    %v1192 = vsub.f32 1.0, %v1191
    %v1193 = vmul.f32 %v1190, %v1192
    %v1194 = vadd.f32 %v1190, %v1193
    %vm1195 = vweird.f32 %v1189
    %vm1196 = vweird.f32 %v1190
    %vm1197 = vmor %vm1195, %vm1196
    %v1198 = vsel %vm1197, %v1190, %v1194
    %v1199 = vand.u32 2147483647, %v1189
    %vm1200 = vcmp.eq.f32.partialorder %v1199, 8.507059e+37
    %v1201 = vand.u32 %v1189, 2147483648
    %v1202 = vor.u32 1.1754944e-38, %v1201
    %v1203 = vsel %vm1200, %v1202, %v1198
    %v1204 = vmul.f32 1.0, %v1203
    %v1205 = vsel %vm90, %v1185, %v1204
    %v1206 = vmul.f32 %v1205, %v1145
    %1208 = vrot.lane.b32.xlu0 %v1205, 64
    %v1209 = vpop.permute.xlu0 %1208
    %v1211 = vmul.f32 %v1205, %v1209
    %1213 = vrot.lane.b32.xlu0 %v1211, 32
    %v1214 = vpop.permute.xlu0 %1213
    %v1216 = vadd.f32 %v1206, %v1214
    %v1217 = vtanh.pop %v1216
    %1219 = vrot.lane.b32.xlu0 %v1217, 64
    %v1220 = vpop.permute.xlu0 %1219
    %v1222 = vmul.f32 %v1205, %v1220
    %1224 = vrot.lane.b32.xlu0 %v1222, 32
    %v1225 = vpop.permute.xlu0 %1224
    %1227 = vst.msk [vmem:[%s548] sm:$0xff] %vm186, %v1225
    %v1228 = vld [vmem:[%s550] sm:$0xff]
    %v1229 = vld [vmem:[%s7] sm:$0xff]
    %v1230 = vld [vmem:[%s7 + $0x8] sm:$0xff]
    %v1231 = vld [vmem:[%s7 + $0x10] sm:$0xff]
    %v1232 = vld [vmem:[%s7 + $0x18] sm:$0xff]
    %v1233 = vsel %vm186, %v1225, 0
    %1235 = vmatpush.msra.mxu0 0.0
    %1236 = vmatpush.msra.mxu0 0.0
    %1237 = vmatpush.msra.mxu0 0.0
    %1238 = vmatpush.msra.mxu0 0.0
    %1239 = vmatpush.msra.mxu0 0.0
    %1240 = vmatpush.msra.mxu0 0.0
    %1241 = vmatpush.msra.mxu0 0.0
    %1242 = vmatpush.msra.mxu0 0.0
    %1243 = vmatpush.msra.mxu0 0.0
    %1244 = vmatpush.msra.mxu0 0.0
    %1245 = vmatpush.msra.mxu0 0.0
    %1246 = vmatpush.msra.mxu0 0.0
    %1247 = vmatpush.msra.mxu0 %v1232
    %1248 = vmatpush.msra.mxu0 %v1231
    %1249 = vmatpush.msra.mxu0 %v1230
    %1250 = vmatpush.msra.mxu0 %v1229
    %1251 = vmatmul.f32.gmra.mxu0 %v1233
    %v1252 = vpop.f32.mrf.mxu0
    %v1253 = vadd.f32 0.0, %v1252
    %1254 = vdwg.mxu0
    %v1255 = vadd.f32 %v1228, %v1253
    %v1256 = vtanh.pop %v1255
    %v1257 = vxor.u32 %v1255, 2147483648
    %v1258 = vmul.f32 %v1257, 1.442695
    %v1259 = vpow.pop %v1258
    %v1260 = vadd.f32 %v1259, 1.0
    %v1261 = vrcp.pop %v1260
    %v1262 = vmul.f32 %v1260, %v1261
    %v1263 = vsub.f32 1.0, %v1262
    %v1264 = vmul.f32 %v1261, %v1263
    %v1265 = vadd.f32 %v1261, %v1264
    %vm1266 = vweird.f32 %v1260
    %vm1267 = vweird.f32 %v1261
    %vm1268 = vmor %vm1266, %vm1267
    %v1269 = vsel %vm1268, %v1261, %v1265
    %v1270 = vand.u32 2147483647, %v1260
    %vm1271 = vcmp.eq.f32.partialorder %v1270, 8.507059e+37
    %v1272 = vand.u32 %v1260, 2147483648
    %v1273 = vor.u32 1.1754944e-38, %v1272
    %v1274 = vsel %vm1271, %v1273, %v1269
    %v1275 = vmul.f32 1.0, %v1274
    %v1276 = vsel %vm90, %v1256, %v1275
    %v1277 = vmul.f32 %v1276, %v1216
    %1279 = vrot.lane.b32.xlu0 %v1276, 64
    %v1280 = vpop.permute.xlu0 %1279
    %v1282 = vmul.f32 %v1276, %v1280
    %1284 = vrot.lane.b32.xlu0 %v1282, 32
    %v1285 = vpop.permute.xlu0 %1284
    %v1287 = vadd.f32 %v1277, %v1285
    %v1288 = vtanh.pop %v1287
    %1290 = vrot.lane.b32.xlu0 %v1288, 64
    %v1291 = vpop.permute.xlu0 %1290
    %v1293 = vmul.f32 %v1276, %v1291
    %1295 = vrot.lane.b32.xlu0 %v1293, 32
    %v1296 = vpop.permute.xlu0 %1295
    %1298 = vst.msk [vmem:[%s621] sm:$0xff] %vm186, %v1296
    %v1299 = vld [vmem:[%s623] sm:$0xff]
    %v1300 = vld [vmem:[%s7] sm:$0xff]
    %v1301 = vld [vmem:[%s7 + $0x8] sm:$0xff]
    %v1302 = vld [vmem:[%s7 + $0x10] sm:$0xff]
    %v1303 = vld [vmem:[%s7 + $0x18] sm:$0xff]
    %v1304 = vsel %vm186, %v1296, 0
    %1306 = vmatpush.msra.mxu0 0.0
    %1307 = vmatpush.msra.mxu0 0.0
    %1308 = vmatpush.msra.mxu0 0.0
    %1309 = vmatpush.msra.mxu0 0.0
    %1310 = vmatpush.msra.mxu0 0.0
    %1311 = vmatpush.msra.mxu0 0.0
    %1312 = vmatpush.msra.mxu0 0.0
    %1313 = vmatpush.msra.mxu0 0.0
    %1314 = vmatpush.msra.mxu0 0.0
    %1315 = vmatpush.msra.mxu0 0.0
    %1316 = vmatpush.msra.mxu0 0.0
    %1317 = vmatpush.msra.mxu0 0.0
    %1318 = vmatpush.msra.mxu0 %v1303
    %1319 = vmatpush.msra.mxu0 %v1302
    %1320 = vmatpush.msra.mxu0 %v1301
    %1321 = vmatpush.msra.mxu0 %v1300
    %1322 = vmatmul.f32.gmra.mxu0 %v1304
    %v1323 = vpop.f32.mrf.mxu0
    %v1324 = vadd.f32 0.0, %v1323
    %1325 = vdwg.mxu0
    %v1326 = vadd.f32 %v1299, %v1324
    %v1327 = vtanh.pop %v1326
    %v1328 = vxor.u32 %v1326, 2147483648
    %v1329 = vmul.f32 %v1328, 1.442695
    %v1330 = vpow.pop %v1329
    %v1331 = vadd.f32 %v1330, 1.0
    %v1332 = vrcp.pop %v1331
    %v1333 = vmul.f32 %v1331, %v1332
    %v1334 = vsub.f32 1.0, %v1333
    %v1335 = vmul.f32 %v1332, %v1334
    %v1336 = vadd.f32 %v1332, %v1335
    %vm1337 = vweird.f32 %v1331
    %vm1338 = vweird.f32 %v1332
    %vm1339 = vmor %vm1337, %vm1338
    %v1340 = vsel %vm1339, %v1332, %v1336
    %v1341 = vand.u32 2147483647, %v1331
    %vm1342 = vcmp.eq.f32.partialorder %v1341, 8.507059e+37
    %v1343 = vand.u32 %v1331, 2147483648
    %v1344 = vor.u32 1.1754944e-38, %v1343
    %v1345 = vsel %vm1342, %v1344, %v1340
    %v1346 = vmul.f32 1.0, %v1345
    %v1347 = vsel %vm90, %v1327, %v1346
    %v1348 = vmul.f32 %v1347, %v1287
    %1350 = vrot.lane.b32.xlu0 %v1347, 64
    %v1351 = vpop.permute.xlu0 %1350
    %v1353 = vmul.f32 %v1347, %v1351
    %1355 = vrot.lane.b32.xlu0 %v1353, 32
    %v1356 = vpop.permute.xlu0 %1355
    %v1358 = vadd.f32 %v1348, %v1356
    %v1359 = vtanh.pop %v1358
    %1361 = vrot.lane.b32.xlu0 %v1359, 64
    %v1362 = vpop.permute.xlu0 %1361
    %v1364 = vmul.f32 %v1347, %v1362
    %1366 = vrot.lane.b32.xlu0 %v1364, 32
    %v1367 = vpop.permute.xlu0 %1366
    %1369 = vst.msk [vmem:[%s694] sm:$0xff] %vm186, %v1367
    %v1370 = vld [vmem:[%s696] sm:$0xff]
    %v1371 = vld [vmem:[%s7] sm:$0xff]
    %v1372 = vld [vmem:[%s7 + $0x8] sm:$0xff]
    %v1373 = vld [vmem:[%s7 + $0x10] sm:$0xff]
    %v1374 = vld [vmem:[%s7 + $0x18] sm:$0xff]
    %v1375 = vsel %vm186, %v1367, 0
    %1377 = vmatpush.msra.mxu0 0.0
    %1378 = vmatpush.msra.mxu0 0.0
    %1379 = vmatpush.msra.mxu0 0.0
    %1380 = vmatpush.msra.mxu0 0.0
    %1381 = vmatpush.msra.mxu0 0.0
    %1382 = vmatpush.msra.mxu0 0.0
    %1383 = vmatpush.msra.mxu0 0.0
    %1384 = vmatpush.msra.mxu0 0.0
    %1385 = vmatpush.msra.mxu0 0.0
    %1386 = vmatpush.msra.mxu0 0.0
    %1387 = vmatpush.msra.mxu0 0.0
    %1388 = vmatpush.msra.mxu0 0.0
    %1389 = vmatpush.msra.mxu0 %v1374
    %1390 = vmatpush.msra.mxu0 %v1373
    %1391 = vmatpush.msra.mxu0 %v1372
    %1392 = vmatpush.msra.mxu0 %v1371
    %1393 = vmatmul.f32.gmra.mxu0 %v1375
    %v1394 = vpop.f32.mrf.mxu0
    %v1395 = vadd.f32 0.0, %v1394
    %1396 = vdwg.mxu0
    %v1397 = vadd.f32 %v1370, %v1395
    %v1398 = vtanh.pop %v1397
    %v1399 = vxor.u32 %v1397, 2147483648
    %v1400 = vmul.f32 %v1399, 1.442695
    %v1401 = vpow.pop %v1400
    %v1402 = vadd.f32 %v1401, 1.0
    %v1403 = vrcp.pop %v1402
    %v1404 = vmul.f32 %v1402, %v1403
    %v1405 = vsub.f32 1.0, %v1404
    %v1406 = vmul.f32 %v1403, %v1405
    %v1407 = vadd.f32 %v1403, %v1406
    %vm1408 = vweird.f32 %v1402
    %vm1409 = vweird.f32 %v1403
    %vm1410 = vmor %vm1408, %vm1409
    %v1411 = vsel %vm1410, %v1403, %v1407
    %v1412 = vand.u32 2147483647, %v1402
    %vm1413 = vcmp.eq.f32.partialorder %v1412, 8.507059e+37
    %v1414 = vand.u32 %v1402, 2147483648
    %v1415 = vor.u32 1.1754944e-38, %v1414
    %v1416 = vsel %vm1413, %v1415, %v1411
    %v1417 = vmul.f32 1.0, %v1416
    %v1418 = vsel %vm90, %v1398, %v1417
    %v1419 = vmul.f32 %v1418, %v1358
    %1421 = vrot.lane.b32.xlu0 %v1418, 64
    %v1422 = vpop.permute.xlu0 %1421
    %v1424 = vmul.f32 %v1418, %v1422
    %1426 = vrot.lane.b32.xlu0 %v1424, 32
    %v1427 = vpop.permute.xlu0 %1426
    %v1429 = vadd.f32 %v1419, %v1427
    %v1430 = vtanh.pop %v1429
    %1432 = vrot.lane.b32.xlu0 %v1430, 64
    %v1433 = vpop.permute.xlu0 %1432
    %v1435 = vmul.f32 %v1418, %v1433
    %1437 = vrot.lane.b32.xlu0 %v1435, 32
    %v1438 = vpop.permute.xlu0 %1437
    %1440 = vst.msk [vmem:[%s767] sm:$0xff] %vm186, %v1438
    %1441 = vst.msk [vmem:[%s864] sm:$0xff] %vm186, %v1438
    %1443 = vrot.lane.b32.xlu0 %v1429, 96
    %v1444 = vpop.permute.xlu0 %1443
    %1446 = vst.msk [vmem:[%s866] sm:$0xff] %vm186, %v1444
    %v1447 = vld [vmem:[#allocation5] sm:$0xff]
    %v1448 = vld [vmem:[#allocation5 + $0x8] sm:$0xff]
    %v1449 = vld [vmem:[#allocation5 + $0x10] sm:$0xff]
    %v1450 = vld [vmem:[#allocation5 + $0x18] sm:$0xff]
    %v1451 = vld [vmem:[#allocation5 + $0x20] sm:$0xff]
    %v1452 = vld [vmem:[#allocation5 + $0x28] sm:$0xff]
    %v1453 = vld [vmem:[#allocation5 + $0x30] sm:$0xff]
    %v1454 = vld [vmem:[#allocation5 + $0x38] sm:$0xff]
    %v1455 = vld [vmem:[#allocation8] sm:$0xff]
    %v1456 = vld [vmem:[#allocation8 + $0x8] sm:$0xff]
    %v1457 = vld [vmem:[#allocation8 + $0x10] sm:$0xff]
    %v1458 = vld [vmem:[#allocation8 + $0x18] sm:$0xff]
    %v1459 = vld [vmem:[%s10] sm:$0x1]
    %v1461 = vperm.slane %v1459, 0
    %v1464 = vsel %vm186, %v1447, 0
    %v1467 = vsel %vm186, %v1448, 0
    %v1470 = vsel %vm186, %v1449, 0
    %v1473 = vsel %vm186, %v1450, 0
    %v1476 = vsel %vm186, %v1451, 0
    %v1479 = vsel %vm186, %v1452, 0
    %v1482 = vsel %vm186, %v1453, 0
    %v1485 = vsel %vm186, %v1454, 0
    %1487 = vmatpush.msra.mxu0 0.0
    %1488 = vmatpush.msra.mxu0 0.0
    %1489 = vmatpush.msra.mxu0 0.0
    %1490 = vmatpush.msra.mxu0 0.0
    %1491 = vmatpush.msra.mxu0 0.0
    %1492 = vmatpush.msra.mxu0 0.0
    %1493 = vmatpush.msra.mxu0 0.0
    %1494 = vmatpush.msra.mxu0 0.0
    %1495 = vmatpush.msra.mxu0 0.0
    %1496 = vmatpush.msra.mxu0 0.0
    %1497 = vmatpush.msra.mxu0 0.0
    %1498 = vmatpush.msra.mxu0 0.0
    %1499 = vmatpush.msra.mxu0 %v1458
    %1500 = vmatpush.msra.mxu0 %v1457
    %1501 = vmatpush.msra.mxu0 %v1456
    %1502 = vmatpush.msra.mxu0 %v1455
    %1503 = vmatmul.f32.gmra.mxu0 %v1464
    %v1504 = vpop.f32.mrf.mxu0
    %v1505 = vadd.f32 %v1461, %v1504
    %1506 = vmatmul.f32.gmra.mxu0 %v1467
    %v1507 = vpop.f32.mrf.mxu0
    %v1508 = vadd.f32 %v1461, %v1507
    %1509 = vmatmul.f32.gmra.mxu0 %v1470
    %v1510 = vpop.f32.mrf.mxu0
    %v1511 = vadd.f32 %v1461, %v1510
    %1512 = vmatmul.f32.gmra.mxu0 %v1473
    %v1513 = vpop.f32.mrf.mxu0
    %v1514 = vadd.f32 %v1461, %v1513
    %1515 = vmatmul.f32.gmra.mxu0 %v1476
    %v1516 = vpop.f32.mrf.mxu0
    %v1517 = vadd.f32 %v1461, %v1516
    %1518 = vmatmul.f32.gmra.mxu0 %v1479
    %v1519 = vpop.f32.mrf.mxu0
    %v1520 = vadd.f32 %v1461, %v1519
    %1521 = vmatmul.f32.gmra.mxu0 %v1482
    %v1522 = vpop.f32.mrf.mxu0
    %v1523 = vadd.f32 %v1461, %v1522
    %1524 = vmatmul.f32.gmra.mxu0 %v1485
    %v1525 = vpop.f32.mrf.mxu0
    %v1526 = vadd.f32 %v1461, %v1525
    %1527 = vdwg.mxu0
    %1528 = vst [vmem:[%s11] sm:$0xff] %v1505
    %1529 = vst [vmem:[%s11 + $0x8] sm:$0xff] %v1508
    %1530 = vst [vmem:[%s11 + $0x10] sm:$0xff] %v1511
    %1531 = vst [vmem:[%s11 + $0x18] sm:$0xff] %v1514
    %1532 = vst [vmem:[%s11 + $0x20] sm:$0xff] %v1517
    %1533 = vst [vmem:[%s11 + $0x28] sm:$0xff] %v1520
    %1534 = vst [vmem:[%s11 + $0x30] sm:$0xff] %v1523
    %1535 = vst [vmem:[%s11 + $0x38] sm:$0xff] %v1526
    %v1536 = vld [vmem:[#allocation2] sm:$0xff]
    %v1537 = vld [vmem:[#allocation2 + $0x8] sm:$0xff]
    %1538 = vst.msk [vmem:[%s12] sm:$0xff] %vm186, %v1536
    %1539 = vst.msk [vmem:[%s12 + $0x8] sm:$0xff] %vm186, %v1537
    %v1540 = vld [vmem:[#allocation3] sm:$0xff]
    %v1541 = vld [vmem:[#allocation3 + $0x8] sm:$0xff]
    %1542 = vst.msk [vmem:[%s13] sm:$0xff] %vm186, %v1540
    %1543 = vst.msk [vmem:[%s13 + $0x8] sm:$0xff] %vm186, %v1541
    // Predicated region
    $region58: #{rnn_model_forward.1} parent=1 // pred_check
      _
    $region59: #{rnn_model_forward.1} parent=1 // pred_check_branch
      %1545 = sbr.rel (0) target = $region61
    $region60: #{rnn_model_forward.1} parent=1 // pred_region
      _
    $region61: #{rnn_model_forward.1} parent=1 // pred_fallthru
      _
    // Predicated region
    $region62: #{rnn_model_forward.1} parent=1 // pred_check
      _
    $region63: #{rnn_model_forward.1} parent=1 // pred_check_branch
      %1547 = sbr.rel (0) target = $region65
    $region64: #{rnn_model_forward.1} parent=1 // pred_region
      _
    $region65: #{rnn_model_forward.1} parent=1 // pred_fallthru
      _
    // Predicated region
    $region66: #{rnn_model_forward.1} parent=1 // pred_check
      _
    $region67: #{rnn_model_forward.1} parent=1 // pred_check_branch
      %1549 = sbr.rel (0) target = $region69
    $region68: #{rnn_model_forward.1} parent=1 // pred_region
      _
    $region69: #{rnn_model_forward.1} parent=1 // pred_fallthru
      _
    // Predicated region
    $region70: #{rnn_model_forward.1} parent=1 // pred_check
      _
    $region71: #{rnn_model_forward.1} parent=1 // pred_check_branch
      %1551 = sbr.rel (0) target = $region73
    $region72: #{rnn_model_forward.1} parent=1 // pred_region
      _
    $region73: #{rnn_model_forward.1} parent=1 // pred_fallthru
      _
    // Predicated region
    $region74: #{rnn_model_forward.1} parent=1 // pred_check
      _
    $region75: #{rnn_model_forward.1} parent=1 // pred_check_branch
      %1553 = sbr.rel (0) target = $region77
    $region76: #{rnn_model_forward.1} parent=1 // pred_region
      _
    $region77: #{rnn_model_forward.1} parent=1 // pred_fallthru
      _
    // Predicated region
    $region78: #{rnn_model_forward.1} parent=1 // pred_check
      _
    $region79: #{rnn_model_forward.1} parent=1 // pred_check_branch
      %1555 = sbr.rel (0) target = $region81
    $region80: #{rnn_model_forward.1} parent=1 // pred_region
      _
    $region81: #{rnn_model_forward.1} parent=1 // pred_fallthru
      _
    %1556 = vsyncpa [#allocation7], 1
    %1557 = vsyncpa [#allocation9], 1

</llo_original>
